<compile_context>
chip_gen: v7x
topology: tpu7x:2x2x1
jax: 0.10.0
libtpu: 0.0.40
codegen_flags: <defaults>
</compile_context>

<pallas_src>
import functools

import jax
import jax.numpy as jnp
from jax.experimental import pallas as pl
from jax.experimental.pallas import tpu as pltpu


NUM_LAYERS = 5
HP = 128        # lane-dense padded width for features / hidden / classes
TILE_M = 256    # A_hat row-slab height (multiple of 8; 128/256-MXU friendly)


def _round_up(x, m):
    return ((x + m - 1) // m) * m


def _vmem_limit_bytes():
    """Generation-aware scoped-VMEM budget (leave ~25% headroom)."""
    default_cap = 64 * 1024 * 1024
    try:
        info = pltpu.get_tpu_info()
        cap = getattr(info, "vmem_capacity_bytes", default_cap) or default_cap
    except Exception:  # pragma: no cover - query not available
        cap = default_cap
    return int(min(int(cap * 0.75), 112 * 1024 * 1024))


def _fits_resident(n_pad, g_pad, c_pad, vmem_limit):
    """Can the full A_hat stay VMEM-resident alongside everything else?"""
    bf16, f32 = 2, 4
    base = (
        2 * n_pad * HP * bf16                      # X0 (constant block, <=2 bufs)
        + 2 * NUM_LAYERS * HP * HP * bf16          # conv weight stack
        + 2 * NUM_LAYERS * 1 * HP * f32            # conv bias stack
        + 2 * g_pad * TILE_M * bf16                # streamed pooling slab
        + 2 * (HP * c_pad + c_pad) * f32           # classifier weight / bias
        + 2 * g_pad * c_pad * f32                  # output block
        + 2 * n_pad * HP * bf16                    # XW ping-pong scratch
        + g_pad * HP * f32                         # pooled accumulator
    )
    resident_a = 2 * n_pad * n_pad * bf16          # worst case double-buffered
    return (base + resident_a) <= int(0.85 * vmem_limit)


# ----------------------------------------------------------------------------
# Fused Pallas kernel: 5 x (A_hat @ XW + b [+ ReLU]) + mean-pool + Linear
# ----------------------------------------------------------------------------
def fused_gcn_kernel(a_ref, x0_ref, w_ref, b_ref, p_ref, wlt_ref, blt_ref,
                     o_ref, xw_scr, pool_acc, *,
                     num_layers, num_row_tiles, tile_m, a_resident):
    l = pl.program_id(0)        # layer index        (outer, sequential)
    i = pl.program_id(1)        # A_hat row-tile idx (inner, sequential)
    last_l = num_layers - 1

    # ---- one-time init at the very first grid step --------------------------
    @pl.when(jnp.logical_and(l == 0, i == 0))
    def _init():
        o_ref[...] = jnp.zeros_like(o_ref)
        pool_acc[...] = jnp.zeros_like(pool_acc)
        # XW^(0) = X0 @ W[0]: once per kernel (NOT once per layer).
        xw0 = jnp.dot(x0_ref[...], w_ref[0],
                      preferred_element_type=jnp.float32)
        xw_scr[1, :, :] = xw0.astype(xw_scr.dtype)

    # Ping-pong slots: XW^(l) lives in slot (l+1)%2, XW^(l+1) goes to l%2.
    src = (l + 1) % 2
    dst = l % 2

    row = pl.multiple_of(i * tile_m, tile_m)
    if a_resident:
        a_slab = a_ref[pl.ds(row, tile_m), :]     # slice the resident A_hat
    else:
        a_slab = a_ref[...]                       # streamed (tile_m, n_pad) slab

    # ---- propagate: H^(l+1)[rows] = A_hat[rows, :] @ XW^(l) + b[l] ----------
    out = jnp.dot(a_slab, xw_scr[src],
                  preferred_element_type=jnp.float32) + b_ref[l]

    # ---- conv1..conv4: ReLU and immediately produce next-layer XW rows ------
    @pl.when(l < last_l)
    def _relu_and_next_xw():
        h = jnp.maximum(out, 0.0).astype(jnp.bfloat16)
        xw_next = jnp.dot(h, w_ref[l + 1], preferred_element_type=jnp.float32)
        xw_scr[dst, pl.ds(row, tile_m), :] = xw_next.astype(xw_scr.dtype)

    # ---- conv5: fuse global_mean_pool into the row-slab loop ----------------
    @pl.when(l == last_l)
    def _pool():
        pool_acc[...] += jnp.dot(p_ref[...], out.astype(jnp.bfloat16),
                                 preferred_element_type=jnp.float32)

    # ---- final step: dropout(identity, eval) + Linear classifier ------------
    @pl.when(jnp.logical_and(l == last_l, i == num_row_tiles - 1))
    def _classify():
        logits = jnp.dot(pool_acc[...], wlt_ref[...],
                         preferred_element_type=jnp.float32) + blt_ref[...]
        o_ref[...] = logits.astype(o_ref.dtype)


def gcn_forward_fused(packed):
    n_pad, g_pad, c_pad = packed["n_pad"], packed["g_pad"], packed["c_pad"]
    num_tiles = n_pad // TILE_M
    vmem_limit = _vmem_limit_bytes()
    a_resident = _fits_resident(n_pad, g_pad, c_pad, vmem_limit)

    if a_resident:
        # Whole A_hat DMA'd once, reused by all 5 layers.
        a_spec = pl.BlockSpec((n_pad, n_pad), lambda l, i: (0, 0))
    else:
        # Fallback: stream one row slab per grid step (re-read once per layer).
        a_spec = pl.BlockSpec((TILE_M, n_pad), lambda l, i: (i, 0))

    kernel = functools.partial(
        fused_gcn_kernel, num_layers=NUM_LAYERS, num_row_tiles=num_tiles,
        tile_m=TILE_M, a_resident=a_resident)

    out = pl.pallas_call(
        kernel,
        out_shape=jax.ShapeDtypeStruct((g_pad, c_pad), jnp.float32),
        grid_spec=pltpu.PrefetchScalarGridSpec(
            num_scalar_prefetch=0,
            grid=(NUM_LAYERS, num_tiles),
            in_specs=[
                a_spec,
                # X0: read once at the very first step.
                pl.BlockSpec((n_pad, HP), lambda l, i: (0, 0)),
                # Full conv weight / bias stacks stay resident (W[l+1] needed
                # while processing layer l).
                pl.BlockSpec((NUM_LAYERS, HP, HP), lambda l, i: (0, 0, 0)),
                pl.BlockSpec((NUM_LAYERS, 1, HP), lambda l, i: (0, 0, 0)),
                # Pooling matrix: streamed column slab matching the row slab.
                pl.BlockSpec((g_pad, TILE_M), lambda l, i: (0, i)),
                # Classifier weights (resident, tiny).
                pl.BlockSpec((HP, c_pad), lambda l, i: (0, 0)),
                pl.BlockSpec((1, c_pad), lambda l, i: (0, 0)),
            ],
            out_specs=pl.BlockSpec((g_pad, c_pad), lambda l, i: (0, 0)),
            scratch_shapes=[
                pltpu.VMEM((2, n_pad, HP), jnp.bfloat16),   # XW ping-pong
                pltpu.VMEM((g_pad, HP), jnp.float32),       # pooled accumulator
            ],
        ),
        compiler_params=pltpu.CompilerParams(
            # Scratch state carried across steps -> both axes must be sequential.
            dimension_semantics=("arbitrary", "arbitrary"),
            vmem_limit_bytes=vmem_limit,
        ),
    )(packed["a"], packed["x"], packed["w"], packed["b"],
      packed["p"], packed["wl"], packed["bl"])

    return out[:packed["g"], :packed["c"]]


# ----------------------------------------------------------------------------
# Host-side glue: normalized adjacency, pooling matrix, params, packing
# ----------------------------------------------------------------------------
def build_normalized_adjacency(edge_index, num_nodes):
    src, dst = edge_index[0], edge_index[1]
    a = jnp.zeros((num_nodes, num_nodes), jnp.float32).at[dst, src].add(1.0)
    # PyG add_remaining_self_loops: only add a self-loop where one is missing.
    diag = jnp.diagonal(a)
    a = a + jnp.diag(jnp.where(diag > 0.0, 0.0, 1.0))
    deg = jnp.sum(a, axis=1)
    d_inv_sqrt = jnp.where(deg > 0, jax.lax.rsqrt(deg), 0.0)
    return d_inv_sqrt[:, None] * a * d_inv_sqrt[None, :]


def build_pool_matrix(batch, num_graphs, num_nodes):
    one_hot = (batch[None, :] == jnp.arange(num_graphs)[:, None]).astype(jnp.float32)
    counts = jnp.maximum(jnp.sum(one_hot, axis=1, keepdims=True), 1.0)
    return one_hot / counts


def glorot(key, fan_in, fan_out):
    s = jnp.sqrt(6.0 / (fan_in + fan_out))
    return jax.random.uniform(key, (fan_in, fan_out), jnp.float32, -s, s)


def init_params(key, node_features_dim, hidden_dim, num_classes):
    keys = jax.random.split(key, 8)
    params = {}
    dims_in = [node_features_dim] + [hidden_dim] * 4
    for i in range(NUM_LAYERS):
        params[f"conv{i + 1}_w"] = glorot(keys[i], dims_in[i], hidden_dim)
        params[f"conv{i + 1}_b"] = jnp.zeros((hidden_dim,), jnp.float32)
    bound = 1.0 / jnp.sqrt(hidden_dim)
    params["lin_w"] = jax.random.uniform(
        keys[5], (num_classes, hidden_dim), jnp.float32, -bound, bound)
    params["lin_b"] = jax.random.uniform(
        keys[6], (num_classes,), jnp.float32, -bound, bound)
    return params


def pack_inputs(params, x, a_hat, pool_mat):
    """One-time padding / stacking / transposes (hoisted out of the hot path)."""
    n, f = x.shape
    g = pool_mat.shape[0]
    h = params["conv1_w"].shape[1]
    c = params["lin_w"].shape[0]

    n_pad = _round_up(max(n, TILE_M), TILE_M)
    g_pad = _round_up(g, 8)
    c_pad = _round_up(c, 128)

    a_p = jnp.zeros((n_pad, n_pad), jnp.float32).at[:n, :n].set(a_hat)
    x_p = jnp.zeros((n_pad, HP), jnp.float32).at[:n, :f].set(x)

    w_stack, b_stack = [], []
    for i in range(NUM_LAYERS):
        w = params[f"conv{i + 1}_w"]
        b = params[f"conv{i + 1}_b"]
        wp = jnp.zeros((HP, HP), jnp.float32).at[:w.shape[0], :w.shape[1]].set(w)
        bp = jnp.zeros((HP,), jnp.float32).at[:b.shape[0]].set(b)
        w_stack.append(wp)
        b_stack.append(bp)

    p_p = jnp.zeros((g_pad, n_pad), jnp.float32).at[:g, :n].set(pool_mat)
    wl_p = jnp.zeros((HP, c_pad), jnp.float32).at[:h, :c].set(params["lin_w"].T)
    bl_p = jnp.zeros((1, c_pad), jnp.float32).at[0, :c].set(params["lin_b"])

    return dict(
        a=a_p.astype(jnp.bfloat16),                       # bf16 MXU inputs
        x=x_p.astype(jnp.bfloat16),
        w=jnp.stack(w_stack).astype(jnp.bfloat16),        # (5, HP, HP)
        b=jnp.stack(b_stack)[:, None, :],                 # (5, 1, HP) f32
        p=p_p.astype(jnp.bfloat16),                       # (G_pad, N_pad)
        wl=wl_p, bl=bl_p,
        n_pad=n_pad, g_pad=g_pad, c_pad=c_pad, g=g, c=c)


def gcn_reference(params, x, a_hat, pool_mat):
    """Pure-JAX f32 reference matching the PyTorch forward."""
    h = x
    for i in range(1, NUM_LAYERS + 1):
        h = a_hat @ (h @ params[f"conv{i}_w"]) + params[f"conv{i}_b"][None, :]
        if i < NUM_LAYERS:
            h = jax.nn.relu(h)
    pooled = pool_mat @ h
    # dropout(p=0.5, training=False) -> identity
    return pooled @ params["lin_w"].T + params["lin_b"][None, :]


# ----------------------------------------------------------------------------
if __name__ == "__main__":
    NUM_NODES = 384          # pads to 512 -> 2 row slabs of 256
    NODE_FEATURES_DIM = 8
    HIDDEN_DIM = 32
    NUM_CLASSES = 4
    NUM_GRAPHS = 2
    NUM_EDGES = 1200

    key = jax.random.PRNGKey(0)
    k_x, k_e, k_p = jax.random.split(key, 3)

    x = jax.random.normal(k_x, (NUM_NODES, NODE_FEATURES_DIM), jnp.float32)
    edge_index = jax.random.randint(k_e, (2, NUM_EDGES), 0, NUM_NODES, jnp.int32)
    batch = jnp.concatenate(
        [jnp.zeros((NUM_NODES // 2,), jnp.int32),
         jnp.ones((NUM_NODES - NUM_NODES // 2,), jnp.int32)])

    a_hat = build_normalized_adjacency(edge_index, NUM_NODES)
    pool_mat = build_pool_matrix(batch, NUM_GRAPHS, NUM_NODES)
    params = init_params(k_p, NODE_FEATURES_DIM, HIDDEN_DIM, NUM_CLASSES)

    packed = pack_inputs(params, x, a_hat, pool_mat)
    logits = gcn_forward_fused(packed)
    logits = jax.block_until_ready(logits)
    assert logits.shape == (NUM_GRAPHS, NUM_CLASSES), logits.shape
    assert bool(jnp.all(jnp.isfinite(logits)))

    ref = gcn_reference(params, x, a_hat, pool_mat)
    if not jnp.allclose(logits, ref, rtol=5e-2, atol=5e-2):
        raise AssertionError(f"mismatch vs reference:\n{logits}\n{ref}")

    print("KERNEL_OK")
</pallas_src>

<mosaic_0001>
module attributes {stable_mosaic.version = 11 : i64} {
  func.func @fused_gcn_kernel(%arg0: i32, %arg1: i32, %arg2: memref<512x512xbf16, #tpu.memory_space<vmem>>, %arg3: memref<512x128xbf16, #tpu.memory_space<vmem>>, %arg4: memref<5x128x128xbf16, #tpu.memory_space<vmem>>, %arg5: memref<5x1x128xf32, #tpu.memory_space<vmem>>, %arg6: memref<8x256xbf16, #tpu.memory_space<vmem>>, %arg7: memref<128x128xf32, #tpu.memory_space<vmem>>, %arg8: memref<1x128xf32, #tpu.memory_space<vmem>>, %arg9: memref<8x128xf32, #tpu.memory_space<vmem>>, %arg10: memref<2x512x128xbf16, #tpu.memory_space<vmem>>, %arg11: memref<8x128xf32, #tpu.memory_space<vmem>>) attributes {dimension_semantics = [#tpu.dimension_semantics<arbitrary>, #tpu.dimension_semantics<arbitrary>], iteration_bounds = array<i64: 5, 2>, scalar_prefetch = 0 : i64, scratch_operands = 2 : i64, tpu.core_type = #tpu.core_type<tc>, window_params = [{pipeline_mode = #tpu.pipeline_mode<synchronous>, transform_indices = @transform_0, window_bounds = array<i64: 512, 512>}, {pipeline_mode = #tpu.pipeline_mode<synchronous>, transform_indices = @transform_1, window_bounds = array<i64: 512, 128>}, {pipeline_mode = #tpu.pipeline_mode<synchronous>, transform_indices = @transform_2, window_bounds = array<i64: 5, 128, 128>}, {pipeline_mode = #tpu.pipeline_mode<synchronous>, transform_indices = @transform_3, window_bounds = array<i64: 5, 1, 128>}, {transform_indices = @transform_4, window_bounds = array<i64: 8, 256>}, {pipeline_mode = #tpu.pipeline_mode<synchronous>, transform_indices = @transform_5, window_bounds = array<i64: 128, 128>}, {pipeline_mode = #tpu.pipeline_mode<synchronous>, transform_indices = @transform_6, window_bounds = array<i64: 1, 128>}, {pipeline_mode = #tpu.pipeline_mode<synchronous>, transform_indices = @transform_7, window_bounds = array<i64: 8, 128>}]} {
    %c0_i32 = arith.constant 0 : i32
    %0 = arith.cmpi eq, %arg0, %c0_i32 : i32
    %c0_i32_0 = arith.constant 0 : i32
    %1 = arith.cmpi eq, %arg1, %c0_i32_0 : i32
    %2 = arith.andi %0, %1 : i1
    %3 = arith.extui %2 : i1 to i32
    %c0_i32_1 = arith.constant 0 : i32
    %4 = arith.cmpi ne, %3, %c0_i32_1 : i32
    scf.if %4 {
      %cst_23 = arith.constant 0.000000e+00 : f32
      %50 = vector.broadcast %cst_23 : f32 to vector<8x128xf32>
      %c0_24 = arith.constant 0 : index
      %c0_25 = arith.constant 0 : index
      %51 = vector.load %arg9[%c0_24, %c0_25] : memref<8x128xf32, #tpu.memory_space<vmem>>, vector<8x128xf32>
      tpu.vector_store %arg9[%c0_24, %c0_25], %50 {strides = array<i32>} : memref<8x128xf32, #tpu.memory_space<vmem>>, vector<8x128xf32>,
      %cst_26 = arith.constant 0.000000e+00 : f32
      %52 = vector.broadcast %cst_26 : f32 to vector<8x128xf32>
      %c0_27 = arith.constant 0 : index
      %c0_28 = arith.constant 0 : index
      %53 = vector.load %arg11[%c0_27, %c0_28] : memref<8x128xf32, #tpu.memory_space<vmem>>, vector<8x128xf32>
      tpu.vector_store %arg11[%c0_27, %c0_28], %52 {strides = array<i32>} : memref<8x128xf32, #tpu.memory_space<vmem>>, vector<8x128xf32>,
      %c0_29 = arith.constant 0 : index
      %c0_30 = arith.constant 0 : index
      %54 = vector.load %arg3[%c0_29, %c0_30] : memref<512x128xbf16, #tpu.memory_space<vmem>>, vector<512x128xbf16>
      %c0_31 = arith.constant 0 : index
      %c0_32 = arith.constant 0 : index
      %c0_33 = arith.constant 0 : index
      %55 = vector.load %arg4[%c0_31, %c0_32, %c0_33] : memref<5x128x128xbf16, #tpu.memory_space<vmem>>, vector<1x128x128xbf16>
      %56 = vector.shape_cast %55 : vector<1x128x128xbf16> to vector<128x128xbf16>
      %cst_34 = arith.constant dense<0.000000e+00> : vector<512x128xf32>
      %57 = tpu.matmul %54, %56, %cst_34 {dimension_numbers = #tpu.dot_dimension_numbers<[1], [0], [0], [1], [0, 0, 1, 1], [], []>} : vector<512x128xbf16>, vector<128x128xbf16>, vector<512x128xf32> -> vector<512x128xf32>
      %58 = arith.truncf %57 : vector<512x128xf32> to vector<512x128xbf16>
      %c1 = arith.constant 1 : index
      %c0_35 = arith.constant 0 : index
      %c0_36 = arith.constant 0 : index
      %59 = vector.load %arg10[%c1, %c0_35, %c0_36] : memref<2x512x128xbf16, #tpu.memory_space<vmem>>, vector<1x512x128xbf16>
      %60 = vector.shape_cast %59 : vector<1x512x128xbf16> to vector<512x128xbf16>
      %61 = vector.shape_cast %58 : vector<512x128xbf16> to vector<1x512x128xbf16>
      tpu.vector_store %arg10[%c1, %c0_35, %c0_36], %61 {strides = array<i32>} : memref<2x512x128xbf16, #tpu.memory_space<vmem>>, vector<1x512x128xbf16>,
    } else {
    }
    %c1_i32 = arith.constant 1 : i32
    %5 = arith.addi %arg0, %c1_i32 : i32
    %c2_i32 = arith.constant 2 : i32
    %c0_i32_2 = arith.constant 0 : i32
    %6 = arith.cmpi eq, %c2_i32, %c0_i32_2 : i32
    %c1_i32_3 = arith.constant 1 : i32
    %7 = arith.select %6, %c1_i32_3, %c2_i32 : i32
    %8 = arith.remsi %5, %7 : i32
    %c0_i32_4 = arith.constant 0 : i32
    %9 = arith.cmpi ne, %8, %c0_i32_4 : i32
    %c0_i32_5 = arith.constant 0 : i32
    %10 = arith.cmpi slt, %8, %c0_i32_5 : i32
    %c0_i32_6 = arith.constant 0 : i32
    %11 = arith.cmpi slt, %7, %c0_i32_6 : i32
    %12 = arith.xori %10, %11 : i1
    %13 = arith.andi %12, %9 : i1
    %14 = arith.addi %8, %7 : i32
    %15 = arith.select %13, %14, %8 : i32
    %c2_i32_7 = arith.constant 2 : i32
    %c0_i32_8 = arith.constant 0 : i32
    %16 = arith.cmpi eq, %c2_i32_7, %c0_i32_8 : i32
    %c1_i32_9 = arith.constant 1 : i32
    %17 = arith.select %16, %c1_i32_9, %c2_i32_7 : i32
    %18 = arith.remsi %arg0, %17 : i32
    %c0_i32_10 = arith.constant 0 : i32
    %19 = arith.cmpi ne, %18, %c0_i32_10 : i32
    %c0_i32_11 = arith.constant 0 : i32
    %20 = arith.cmpi slt, %18, %c0_i32_11 : i32
    %c0_i32_12 = arith.constant 0 : i32
    %21 = arith.cmpi slt, %17, %c0_i32_12 : i32
    %22 = arith.xori %20, %21 : i1
    %23 = arith.andi %22, %19 : i1
    %24 = arith.addi %18, %17 : i32
    %25 = arith.select %23, %24, %18 : i32
    %c256_i32 = arith.constant 256 : i32
    %26 = arith.muli %arg1, %c256_i32 : i32
    %27 = tpu.assume_multiple %26, 256 : i32
    %28 = arith.index_cast %27 : i32 to index
    %c0 = arith.constant 0 : index
    %29 = vector.load %arg2[%28, %c0] : memref<512x512xbf16, #tpu.memory_space<vmem>>, vector<256x512xbf16>
    %30 = arith.index_cast %15 : i32 to index
    %c0_13 = arith.constant 0 : index
    %c0_14 = arith.constant 0 : index
    %31 = vector.load %arg10[%30, %c0_13, %c0_14] : memref<2x512x128xbf16, #tpu.memory_space<vmem>>, vector<1x512x128xbf16>
    %32 = vector.shape_cast %31 : vector<1x512x128xbf16> to vector<512x128xbf16>
    %cst = arith.constant dense<0.000000e+00> : vector<256x128xf32>
    %33 = tpu.matmul %29, %32, %cst {dimension_numbers = #tpu.dot_dimension_numbers<[1], [0], [0], [1], [0, 0, 1, 1], [], []>} : vector<256x512xbf16>, vector<512x128xbf16>, vector<256x128xf32> -> vector<256x128xf32>
    %34 = arith.index_cast %arg0 : i32 to index
    %c0_15 = arith.constant 0 : index
    %c0_16 = arith.constant 0 : index
    %35 = vector.load %arg5[%34, %c0_15, %c0_16] : memref<5x1x128xf32, #tpu.memory_space<vmem>>, vector<1x1x128xf32>
    %36 = vector.shape_cast %35 : vector<1x1x128xf32> to vector<1x128xf32>
    %37 = vector.broadcast %36 : vector<1x128xf32> to vector<256x128xf32>
    %38 = arith.addf %33, %37 : vector<256x128xf32>
    %c4_i32 = arith.constant 4 : i32
    %39 = arith.cmpi slt, %arg0, %c4_i32 : i32
    %40 = arith.extui %39 : i1 to i32
    %c0_i32_17 = arith.constant 0 : i32
    %41 = arith.cmpi ne, %40, %c0_i32_17 : i32
    scf.if %41 {
      %cst_23 = arith.constant 0.000000e+00 : f32
      %50 = vector.broadcast %cst_23 : f32 to vector<256x128xf32>
      %51 = arith.maximumf %38, %50 : vector<256x128xf32>
      %52 = arith.truncf %51 : vector<256x128xf32> to vector<256x128xbf16>
      %c1_i32_24 = arith.constant 1 : i32
      %53 = arith.addi %arg0, %c1_i32_24 : i32
      %54 = arith.index_cast %53 : i32 to index
      %c0_25 = arith.constant 0 : index
      %c0_26 = arith.constant 0 : index
      %55 = vector.load %arg4[%54, %c0_25, %c0_26] : memref<5x128x128xbf16, #tpu.memory_space<vmem>>, vector<1x128x128xbf16>
      %56 = vector.shape_cast %55 : vector<1x128x128xbf16> to vector<128x128xbf16>
      %cst_27 = arith.constant dense<0.000000e+00> : vector<256x128xf32>
      %57 = tpu.matmul %52, %56, %cst_27 {dimension_numbers = #tpu.dot_dimension_numbers<[1], [0], [0], [1], [0, 0, 1, 1], [], []>} : vector<256x128xbf16>, vector<128x128xbf16>, vector<256x128xf32> -> vector<256x128xf32>
      %58 = arith.truncf %57 : vector<256x128xf32> to vector<256x128xbf16>
      %59 = arith.index_cast %25 : i32 to index
      %60 = arith.index_cast %27 : i32 to index
      %c0_28 = arith.constant 0 : index
      %61 = vector.load %arg10[%59, %60, %c0_28] : memref<2x512x128xbf16, #tpu.memory_space<vmem>>, vector<1x256x128xbf16>
      %62 = vector.shape_cast %61 : vector<1x256x128xbf16> to vector<256x128xbf16>
      %63 = vector.shape_cast %58 : vector<256x128xbf16> to vector<1x256x128xbf16>
      tpu.vector_store %arg10[%59, %60, %c0_28], %63 {strides = array<i32>} : memref<2x512x128xbf16, #tpu.memory_space<vmem>>, vector<1x256x128xbf16>,
    } else {
    }
    %c4_i32_18 = arith.constant 4 : i32
    %42 = arith.cmpi eq, %arg0, %c4_i32_18 : i32
    %43 = arith.extui %42 : i1 to i32
    %c0_i32_19 = arith.constant 0 : i32
    %44 = arith.cmpi ne, %43, %c0_i32_19 : i32
    scf.if %44 {
      %c0_23 = arith.constant 0 : index
      %c0_24 = arith.constant 0 : index
      %50 = vector.load %arg11[%c0_23, %c0_24] : memref<8x128xf32, #tpu.memory_space<vmem>>, vector<8x128xf32>
      %c0_25 = arith.constant 0 : index
      %c0_26 = arith.constant 0 : index
      %51 = vector.load %arg6[%c0_25, %c0_26] : memref<8x256xbf16, #tpu.memory_space<vmem>>, vector<8x256xbf16>
      %52 = arith.truncf %38 : vector<256x128xf32> to vector<256x128xbf16>
      %cst_27 = arith.constant dense<0.000000e+00> : vector<8x128xf32>
      %53 = tpu.matmul %51, %52, %cst_27 {dimension_numbers = #tpu.dot_dimension_numbers<[1], [0], [0], [1], [0, 0, 1, 1], [], []>} : vector<8x256xbf16>, vector<256x128xbf16>, vector<8x128xf32> -> vector<8x128xf32>
      %54 = arith.addf %50, %53 : vector<8x128xf32>
      %c0_28 = arith.constant 0 : index
      %c0_29 = arith.constant 0 : index
      %55 = vector.load %arg11[%c0_28, %c0_29] : memref<8x128xf32, #tpu.memory_space<vmem>>, vector<8x128xf32>
      tpu.vector_store %arg11[%c0_28, %c0_29], %54 {strides = array<i32>} : memref<8x128xf32, #tpu.memory_space<vmem>>, vector<8x128xf32>,
    } else {
    }
    %c4_i32_20 = arith.constant 4 : i32
    %45 = arith.cmpi eq, %arg0, %c4_i32_20 : i32
    %c1_i32_21 = arith.constant 1 : i32
    %46 = arith.cmpi eq, %arg1, %c1_i32_21 : i32
    %47 = arith.andi %45, %46 : i1
    %48 = arith.extui %47 : i1 to i32
    %c0_i32_22 = arith.constant 0 : i32
    %49 = arith.cmpi ne, %48, %c0_i32_22 : i32
    scf.if %49 {
      %c0_23 = arith.constant 0 : index
      %c0_24 = arith.constant 0 : index
      %50 = vector.load %arg11[%c0_23, %c0_24] : memref<8x128xf32, #tpu.memory_space<vmem>>, vector<8x128xf32>
      %c0_25 = arith.constant 0 : index
      %c0_26 = arith.constant 0 : index
      %51 = vector.load %arg7[%c0_25, %c0_26] : memref<128x128xf32, #tpu.memory_space<vmem>>, vector<128x128xf32>
      %cst_27 = arith.constant dense<0.000000e+00> : vector<8x128xf32>
      %52 = tpu.matmul %50, %51, %cst_27 {dimension_numbers = #tpu.dot_dimension_numbers<[1], [0], [0], [1], [0, 0, 1, 1], [], []>} : vector<8x128xf32>, vector<128x128xf32>, vector<8x128xf32> -> vector<8x128xf32>
      %c0_28 = arith.constant 0 : index
      %c0_29 = arith.constant 0 : index
      %53 = vector.load %arg8[%c0_28, %c0_29] : memref<1x128xf32, #tpu.memory_space<vmem>>, vector<1x128xf32>
      %54 = vector.broadcast %53 : vector<1x128xf32> to vector<8x128xf32>
      %55 = arith.addf %52, %54 : vector<8x128xf32>
      %c0_30 = arith.constant 0 : index
      %c0_31 = arith.constant 0 : index
      %56 = vector.load %arg9[%c0_30, %c0_31] : memref<8x128xf32, #tpu.memory_space<vmem>>, vector<8x128xf32>
      tpu.vector_store %arg9[%c0_30, %c0_31], %55 {strides = array<i32>} : memref<8x128xf32, #tpu.memory_space<vmem>>, vector<8x128xf32>,
    } else {
    }
    return
  }
  func.func @transform_0(%arg0: i32, %arg1: i32) -> (i32, i32) {
    %c0_i32 = arith.constant 0 : i32
    %c0_i32_0 = arith.constant 0 : i32
    %c0_i32_1 = arith.constant 0 : i32
    return %c0_i32, %c0_i32_0 : i32, i32
  }
  func.func @transform_1(%arg0: i32, %arg1: i32) -> (i32, i32) {
    %c0_i32 = arith.constant 0 : i32
    %c0_i32_0 = arith.constant 0 : i32
    %c0_i32_1 = arith.constant 0 : i32
    return %c0_i32, %c0_i32_0 : i32, i32
  }
  func.func @transform_2(%arg0: i32, %arg1: i32) -> (i32, i32, i32) {
    %c0_i32 = arith.constant 0 : i32
    %c0_i32_0 = arith.constant 0 : i32
    %c0_i32_1 = arith.constant 0 : i32
    %c0_i32_2 = arith.constant 0 : i32
    return %c0_i32, %c0_i32_0, %c0_i32_1 : i32, i32, i32
  }
  func.func @transform_3(%arg0: i32, %arg1: i32) -> (i32, i32, i32) {
    %c0_i32 = arith.constant 0 : i32
    %c0_i32_0 = arith.constant 0 : i32
    %c0_i32_1 = arith.constant 0 : i32
    %c0_i32_2 = arith.constant 0 : i32
    return %c0_i32, %c0_i32_0, %c0_i32_1 : i32, i32, i32
  }
  func.func @transform_4(%arg0: i32, %arg1: i32) -> (i32, i32) {
    %c0_i32 = arith.constant 0 : i32
    %c0_i32_0 = arith.constant 0 : i32
    return %c0_i32, %arg1 : i32, i32
  }
  func.func @transform_5(%arg0: i32, %arg1: i32) -> (i32, i32) {
    %c0_i32 = arith.constant 0 : i32
    %c0_i32_0 = arith.constant 0 : i32
    %c0_i32_1 = arith.constant 0 : i32
    return %c0_i32, %c0_i32_0 : i32, i32
  }
  func.func @transform_6(%arg0: i32, %arg1: i32) -> (i32, i32) {
    %c0_i32 = arith.constant 0 : i32
    %c0_i32_0 = arith.constant 0 : i32
    %c0_i32_1 = arith.constant 0 : i32
    return %c0_i32, %c0_i32_0 : i32, i32
  }
  func.func @transform_7(%arg0: i32, %arg1: i32) -> (i32, i32) {
    %c0_i32 = arith.constant 0 : i32
    %c0_i32_0 = arith.constant 0 : i32
    %c0_i32_1 = arith.constant 0 : i32
    return %c0_i32, %c0_i32_0 : i32, i32
  }
}

</mosaic_0001>

<llo_original>
// kernel: tpu_custom_call.1
$region0: #{tpu_custom_call.1}
  #allocation0 [shape = 'u32[]', space=smem, size = 0x4, offset = 0x4, fixed_abs, tag = 'smem constant byte address 0x4 - core index']
  #allocation1 [shape = 'u32[144,128]{1,0:T(1,128)}', space=vmem, size = 0x12000, scoped, tag = 'internal scratch']
  #allocation2 [shape = 'bf16[2,512,128]{2,1,0:T(16,128)(2,1)}', space=vmem, size = 0x40000, scoped, tag = 'scratch operand']
  #allocation3 [shape = 'f32[8,128]{1,0:T(8,128)}', space=vmem, size = 0x1000, scoped, tag = 'scratch operand']
  %s0 = inlined_call_operand.hbm [shape: bf16[512,512], index: 0, kind: input, shape index: {}]
  %s1 = inlined_call_operand.hbm [shape: bf16[512,128], index: 1, kind: input, shape index: {}]
  %s2 = inlined_call_operand.hbm [shape: bf16[5,128,128], index: 2, kind: input, shape index: {}]
  %s3 = inlined_call_operand.vmem [shape: f32[5,1,128], index: 3, kind: input, shape index: {}]
  %s4 = inlined_call_operand.hbm [shape: bf16[8,512], index: 4, kind: input, shape index: {}]
  %s5 = inlined_call_operand.hbm [shape: f32[128,128], index: 5, kind: input, shape index: {}]
  %s6 = inlined_call_operand.vmem [shape: f32[1,128], index: 6, kind: input, shape index: {}]
  %s7 = inlined_call_operand.hbm [shape: f32[8,128], index: 7, kind: output, shape index: {}]
  %s8 = sld [smem:[#allocation0]]
  $region97: #{tpu_custom_call.1} parent=0
    _
  %s10 = ssub.s32 1, %s8
  %s11 = scalar_select 0, %s10, %s8
  $region1: #{tpu_custom_call.1} parent=0
    #allocation4 [shape = 'u8[524288]{0}', space=vmem, size = 0x80000, scoped, tag = 'input window, operand 0, single buffered']
    #allocation5 [shape = 's32[2]{0}', space=sflag, size = 0x8, scoped, tag = 'scoped memory for tpu_custom_call.1']
    #allocation6 [shape = 's32[2]{0}', space=sflag, size = 0x8, scoped, tag = 'scoped memory for tpu_custom_call.1']
    #allocation7 [shape = 'u8[131072]{0}', space=vmem, size = 0x20000, scoped, tag = 'input window, operand 1, single buffered']
    #allocation8 [shape = 's32[1]{0}', space=sflag, size = 0x4, scoped, tag = 'scoped memory for tpu_custom_call.1']
    #allocation9 [shape = 'u8[163840]{0}', space=vmem, size = 0x28000, scoped, tag = 'input window, operand 2, single buffered']
    #allocation10 [shape = 'u8[8192]{0}', space=vmem, size = 0x2000, scoped, tag = 'input window, operand 4']
    #allocation11 [shape = 's32[2]{0}', space=sflag, size = 0x8, scoped, tag = 'scoped memory for tpu_custom_call.1']
    #allocation12 [shape = 'u8[65536]{0}', space=vmem, size = 0x10000, scoped, tag = 'input window, operand 5, single buffered']
    #allocation13 [shape = 'u8[4096]{0}', space=vmem, size = 0x1000, scoped, tag = 'output window, operand 0, single buffered']
    %12 = vsyncpa [#allocation5], 0
    %13 = vsyncpa [#allocation8], 0
    %14 = vsyncpa [#allocation11], 0
    %s15 = scalar_lea.sflag [#allocation11], 1
    %16 = vsyncpa %s15, 0
    %17 = vsyncpa [#allocation6], 0
    loop: start=0, step=1, limit=12
    $region2: #{tpu_custom_call.1} parent=1 // loop_pre_header
      _
    $region3: #{tpu_custom_call.1} parent=1 // loop_header
      %s19 = sphi 0, %s23
      %p20 = scmp.ge.s32.totalorder %s19, 12
      %s26 = sphi 0, %s38
      %s27 = sphi 0, %s34
      %s28 = sphi 0, %s26
      %s29 = sphi 0, %s27
      %s30 = sphi 0, %s28
      %s31 = sphi 0, %s29
      %s39 = sphi 0, %s39
      %s41 = sphi 0, %s39
      %s42 = sphi 0, %s41
      %s56 = sphi 0, %s42
      %s60 = sphi 0, %s60
      %s62 = sphi 0, %s60
      %s63 = sphi 0, %s62
      %s77 = sphi 0, %s63
      %s81 = sphi 0, %s81
      %s83 = sphi 0, %s81
      %s84 = sphi 0, %s83
      %s98 = sphi 0, %s84
      %s102 = sphi 0, %s102
      %s104 = sphi 0, %s102
      %s105 = sphi 0, %s104
      %s119 = sphi 0, %s105
      %s125 = sphi 0, %s127
      %s128 = sphi 0, %s125
      %s129 = sphi 0, %s128
      %s145 = sphi 0, %s129
      %s149 = sphi 0, %s149
      %s151 = sphi 0, %s149
      %s152 = sphi 0, %s151
      %s166 = sphi 0, %s152
      %s170 = sphi 0, %s170
      %s172 = sphi 0, %s170
      %s173 = sphi 0, %s172
      %s187 = sphi 0, %s173
      %s191 = sphi 0, %s191
      %s193 = sphi 0, %s191
      %s194 = sphi 0, %s193
      %s208 = sphi 0, %s194
    $region4: #{tpu_custom_call.1} parent=1 // loop_header_branch
      %22 = sbr.rel (%p20) target = $region8
    $region5: #{tpu_custom_call.1} parent=1 // loop_body
      %s24 = ssub.s32 %s19, 1
      %s25 = ssub.s32 %s19, 2
      %s32 = sadd.s32 1, %s27
      %p33 = scmp.ge.s32.totalorder %s32, 2
      %s34 = scalar_select %p33, 0, %s32
      %s35 = sadd.s32 1, %s26
      %s36 = scalar_select %p33, %s35, %s26
      %p37 = scmp.ge.s32.totalorder %s36, 5
      %s38 = scalar_select %p37, 0, %s36
      %s40 = sadd.s32 %s39, 1
      %p43 = scmp.eq.s32.totalorder %s19, 9
      %p44 = scmp.ne.s32.totalorder %s39, %s41
      %p45 = scmp.eq.s32.totalorder %s19, 0
      %p46 = por %p44, %p45
      %p47 = scmp.ne.s32.totalorder %s39, %s41
      %p48 = scmp.eq.s32.totalorder %s24, 9
      %p49 = por %p47, %p48
      %p50 = scmp.ne.s32.totalorder %s41, %s42
      %p51 = scmp.eq.s32.totalorder %s24, 0
      %p52 = por %p50, %p51
      %p53 = scmp.ne.s32.totalorder %s41, %s42
      %p54 = scmp.eq.s32.totalorder %s25, 9
      %p55 = por %p53, %p54
      %p57 = scmp.ne.s32.totalorder %s42, %s56
      %p58 = scmp.eq.s32.totalorder %s25, 0
      %p59 = por %p57, %p58
      %s61 = sadd.s32 %s60, 1
      %p64 = scmp.eq.s32.totalorder %s19, 9
      %p65 = scmp.ne.s32.totalorder %s60, %s62
      %p66 = scmp.eq.s32.totalorder %s19, 0
      %p67 = por %p65, %p66
      %p68 = scmp.ne.s32.totalorder %s60, %s62
      %p69 = scmp.eq.s32.totalorder %s24, 9
      %p70 = por %p68, %p69
      %p71 = scmp.ne.s32.totalorder %s62, %s63
      %p72 = scmp.eq.s32.totalorder %s24, 0
      %p73 = por %p71, %p72
      %p74 = scmp.ne.s32.totalorder %s62, %s63
      %p75 = scmp.eq.s32.totalorder %s25, 9
      %p76 = por %p74, %p75
      %p78 = scmp.ne.s32.totalorder %s63, %s77
      %p79 = scmp.eq.s32.totalorder %s25, 0
      %p80 = por %p78, %p79
      %s82 = sadd.s32 %s81, 1
      %p85 = scmp.eq.s32.totalorder %s19, 9
      %p86 = scmp.ne.s32.totalorder %s81, %s83
      %p87 = scmp.eq.s32.totalorder %s19, 0
      %p88 = por %p86, %p87
      %p89 = scmp.ne.s32.totalorder %s81, %s83
      %p90 = scmp.eq.s32.totalorder %s24, 9
      %p91 = por %p89, %p90
      %p92 = scmp.ne.s32.totalorder %s83, %s84
      %p93 = scmp.eq.s32.totalorder %s24, 0
      %p94 = por %p92, %p93
      %p95 = scmp.ne.s32.totalorder %s83, %s84
      %p96 = scmp.eq.s32.totalorder %s25, 9
      %p97 = por %p95, %p96
      %p99 = scmp.ne.s32.totalorder %s84, %s98
      %p100 = scmp.eq.s32.totalorder %s25, 0
      %p101 = por %p99, %p100
      %s103 = sadd.s32 %s102, 1
      %p106 = scmp.eq.s32.totalorder %s19, 9
      %p107 = scmp.ne.s32.totalorder %s102, %s104
      %p108 = scmp.eq.s32.totalorder %s19, 0
      %p109 = por %p107, %p108
      %p110 = scmp.ne.s32.totalorder %s102, %s104
      %p111 = scmp.eq.s32.totalorder %s24, 9
      %p112 = por %p110, %p111
      %p113 = scmp.ne.s32.totalorder %s104, %s105
      %p114 = scmp.eq.s32.totalorder %s24, 0
      %p115 = por %p113, %p114
      %p116 = scmp.ne.s32.totalorder %s104, %s105
      %p117 = scmp.eq.s32.totalorder %s25, 9
      %p118 = por %p116, %p117
      %p120 = scmp.ne.s32.totalorder %s105, %s119
      %p121 = scmp.eq.s32.totalorder %s25, 0
      %p122 = por %p120, %p121
      %s123 = ssub.s32 %s27, %s34
      %p124 = scmp.eq.s32.totalorder %s123, 0
      %s126 = sadd.s32 %s125, 1
      %s127 = scalar_select %p124, %s125, %s126
      %p130 = pneg %p124
      %p131 = scmp.eq.s32.totalorder %s19, 9
      %p132 = por %p130, %p131
      %p133 = scmp.ne.s32.totalorder %s125, %s128
      %p134 = scmp.eq.s32.totalorder %s19, 0
      %p135 = por %p133, %p134
      %p136 = scmp.ne.s32.totalorder %s125, %s128
      %p137 = scmp.eq.s32.totalorder %s24, 9
      %p138 = por %p136, %p137
      %p139 = scmp.ne.s32.totalorder %s128, %s129
      %p140 = scmp.eq.s32.totalorder %s24, 0
      %p141 = por %p139, %p140
      %p142 = scmp.ne.s32.totalorder %s128, %s129
      %p143 = scmp.eq.s32.totalorder %s25, 9
      %p144 = por %p142, %p143
      %p146 = scmp.ne.s32.totalorder %s129, %s145
      %p147 = scmp.eq.s32.totalorder %s25, 0
      %p148 = por %p146, %p147
      %s150 = sadd.s32 %s149, 1
      %p153 = scmp.eq.s32.totalorder %s19, 9
      %p154 = scmp.ne.s32.totalorder %s149, %s151
      %p155 = scmp.eq.s32.totalorder %s19, 0
      %p156 = por %p154, %p155
      %p157 = scmp.ne.s32.totalorder %s149, %s151
      %p158 = scmp.eq.s32.totalorder %s24, 9
      %p159 = por %p157, %p158
      %p160 = scmp.ne.s32.totalorder %s151, %s152
      %p161 = scmp.eq.s32.totalorder %s24, 0
      %p162 = por %p160, %p161
      %p163 = scmp.ne.s32.totalorder %s151, %s152
      %p164 = scmp.eq.s32.totalorder %s25, 9
      %p165 = por %p163, %p164
      %p167 = scmp.ne.s32.totalorder %s152, %s166
      %p168 = scmp.eq.s32.totalorder %s25, 0
      %p169 = por %p167, %p168
      %s171 = sadd.s32 %s170, 1
      %p174 = scmp.eq.s32.totalorder %s19, 9
      %p175 = scmp.ne.s32.totalorder %s170, %s172
      %p176 = scmp.eq.s32.totalorder %s19, 0
      %p177 = por %p175, %p176
      %p178 = scmp.ne.s32.totalorder %s170, %s172
      %p179 = scmp.eq.s32.totalorder %s24, 9
      %p180 = por %p178, %p179
      %p181 = scmp.ne.s32.totalorder %s172, %s173
      %p182 = scmp.eq.s32.totalorder %s24, 0
      %p183 = por %p181, %p182
      %p184 = scmp.ne.s32.totalorder %s172, %s173
      %p185 = scmp.eq.s32.totalorder %s25, 9
      %p186 = por %p184, %p185
      %p188 = scmp.ne.s32.totalorder %s173, %s187
      %p189 = scmp.eq.s32.totalorder %s25, 0
      %p190 = por %p188, %p189
      %s192 = sadd.s32 %s191, 1
      %p195 = scmp.eq.s32.totalorder %s19, 9
      %p196 = scmp.ne.s32.totalorder %s191, %s193
      %p197 = scmp.eq.s32.totalorder %s19, 0
      %p198 = por %p196, %p197
      %p199 = scmp.ne.s32.totalorder %s191, %s193
      %p200 = scmp.eq.s32.totalorder %s24, 9
      %p201 = por %p199, %p200
      %p202 = scmp.ne.s32.totalorder %s193, %s194
      %p203 = scmp.eq.s32.totalorder %s24, 0
      %p204 = por %p202, %p203
      %p205 = scmp.ne.s32.totalorder %s193, %s194
      %p206 = scmp.eq.s32.totalorder %s25, 9
      %p207 = por %p205, %p206
      %p209 = scmp.ne.s32.totalorder %s194, %s208
      %p210 = scmp.eq.s32.totalorder %s25, 0
      %p211 = por %p209, %p210
      %p212 = scmp.le.s32.totalorder 1, %s19
      %p213 = scmp.lt.s32.totalorder %s19, 11
      %p214 = pnand %p212, %p213
      %p215 = pneg %p214
      // Predicated region
      $region9: #{tpu_custom_call.1} parent=5 // pred_check
        _
      $region10: #{tpu_custom_call.1} parent=5 // pred_check_branch
        %217 = sbr.rel (%p214) target = $region12
      $region11: #{tpu_custom_call.1} parent=5 // pred_region
        %s218 = ssub.s32 %s19, 1
        // Predicated region
        $region13: #{tpu_custom_call.1} parent=11 // pred_check
          %p219 = pneg %p52
        $region14: #{tpu_custom_call.1} parent=11 // pred_check_branch
          %221 = sbr.rel (%p219) target = $region16
        $region15: #{tpu_custom_call.1} parent=11 // pred_region
          %s223 = ssub.s32 16384, 16384
          %224 = vsyncadd [#allocation5], %s223
          %s225 = sshll.u32 [#allocation4], 4
          %s226 = int_to_ptr.vmem [resolvable:$true] %s225
          %231 = dma.hbm_to_vmem [thread:$0]  %s0, 16384, %s226, [#allocation5], 256, 256, 16
        $region16: #{tpu_custom_call.1} parent=11 // pred_fallthru
          _
        // Predicated region
        $region17: #{tpu_custom_call.1} parent=11 // pred_check
          %p232 = pneg %p73
        $region18: #{tpu_custom_call.1} parent=11 // pred_check_branch
          %234 = sbr.rel (%p232) target = $region20
        $region19: #{tpu_custom_call.1} parent=11 // pred_region
          %s236 = ssub.s32 4096, 4096
          %237 = vsyncadd [#allocation8], %s236
          %s238 = sshll.u32 [#allocation7], 4
          %s239 = int_to_ptr.vmem [resolvable:$true] %s238
          %244 = dma.hbm_to_vmem [thread:$0]  %s1, 4096, %s239, [#allocation8], 64, 64, 4
        $region20: #{tpu_custom_call.1} parent=11 // pred_fallthru
          _
        // Predicated region
        $region21: #{tpu_custom_call.1} parent=11 // pred_check
          %p245 = pneg %p94
        $region22: #{tpu_custom_call.1} parent=11 // pred_check_branch
          %247 = sbr.rel (%p245) target = $region24
        $region23: #{tpu_custom_call.1} parent=11 // pred_region
          %s249 = ssub.s32 5120, 5120
          %250 = vsyncadd [#allocation8], %s249
          %s251 = sshll.u32 [#allocation9], 4
          %s252 = int_to_ptr.vmem [resolvable:$true] %s251
          %257 = dma.hbm_to_vmem [thread:$0]  %s2, 5120, %s252, [#allocation8], 64, 64, 4
        $region24: #{tpu_custom_call.1} parent=11 // pred_fallthru
          _
        // Predicated region
        $region25: #{tpu_custom_call.1} parent=11 // pred_check
          %p258 = pneg %p115
        $region26: #{tpu_custom_call.1} parent=11 // pred_check_branch
          %260 = sbr.rel (%p258) target = $region28
        $region27: #{tpu_custom_call.1} parent=11 // pred_region
          _
        $region28: #{tpu_custom_call.1} parent=11 // pred_fallthru
          _
        // Predicated region
        $region29: #{tpu_custom_call.1} parent=11 // pred_check
          %p261 = pneg %p162
        $region30: #{tpu_custom_call.1} parent=11 // pred_check_branch
          %263 = sbr.rel (%p261) target = $region32
        $region31: #{tpu_custom_call.1} parent=11 // pred_region
          %s265 = ssub.s32 2048, 2048
          %266 = vsyncadd [#allocation11], %s265
          %s267 = sshll.u32 [#allocation12], 4
          %s268 = int_to_ptr.vmem [resolvable:$true] %s267
          %273 = dma.hbm_to_vmem [thread:$0]  %s5, 2048, %s268, [#allocation11], 128, 128, 8
        $region32: #{tpu_custom_call.1} parent=11 // pred_fallthru
          _
        // Predicated region
        $region33: #{tpu_custom_call.1} parent=11 // pred_check
          %p274 = pneg %p183
        $region34: #{tpu_custom_call.1} parent=11 // pred_check_branch
          %276 = sbr.rel (%p274) target = $region36
        $region35: #{tpu_custom_call.1} parent=11 // pred_region
          _
        $region36: #{tpu_custom_call.1} parent=11 // pred_fallthru
          _
      $region12: #{tpu_custom_call.1} parent=5 // pred_fallthru
        _
      %p277 = scmp.lt.s32.totalorder %s19, 10
      // Predicated region
      $region37: #{tpu_custom_call.1} parent=5 // pred_check
        %p278 = pneg %p277
      $region38: #{tpu_custom_call.1} parent=5 // pred_check_branch
        %280 = sbr.rel (%p278) target = $region40
      $region39: #{tpu_custom_call.1} parent=5 // pred_region
        // Predicated region
        $region41: #{tpu_custom_call.1} parent=39 // pred_check
          %p281 = pneg %p135
        $region42: #{tpu_custom_call.1} parent=39 // pred_check_branch
          %283 = sbr.rel (%p281) target = $region44
        $region43: #{tpu_custom_call.1} parent=39 // pred_region
          %s284 = sand.u32 %s19, 1
          %s285 = scalar_lea.sflag [#allocation11], %s284
          %s286 = sand.u32 %s125, 1
          %s287 = smul.addr %s286, 8
          %s288 = scalar_lea.vmem [#allocation10], %s287
          %s289 = smul.u32 2, %s27
          %s291 = ssub.s32 128, 128
          %292 = vsyncadd %s285, %s291
          %s293 = smul.addr %s289, 64
          %s294 = scalar_lea.hbm %s4, %s293
          %s296 = sshll.u32 %s288, 4
          %s297 = int_to_ptr.vmem [resolvable:$true] %s296
          %299 = dma.hbm_to_vmem [thread:$0]  %s294, 128, %s297, %s285
        $region44: #{tpu_custom_call.1} parent=39 // pred_fallthru
          _
      $region40: #{tpu_custom_call.1} parent=5 // pred_fallthru
        _
      %p300 = scmp.le.s32.totalorder 1, %s19
      %p301 = scmp.lt.s32.totalorder %s19, 11
      %p302 = pnand %p300, %p301
      %p303 = pneg %p302
      // Predicated region
      $region45: #{tpu_custom_call.1} parent=5 // pred_check
        _
      $region46: #{tpu_custom_call.1} parent=5 // pred_check_branch
        %305 = sbr.rel (%p302) target = $region48
      $region47: #{tpu_custom_call.1} parent=5 // pred_region
        %s306 = ssub.s32 %s19, 1
        // Predicated region
        $region49: #{tpu_custom_call.1} parent=47 // pred_check
          %p307 = pneg %p52
        $region50: #{tpu_custom_call.1} parent=47 // pred_check_branch
          %309 = sbr.rel (%p307) target = $region52
        $region51: #{tpu_custom_call.1} parent=47 // pred_region
          %310 = dma.done [#allocation5], 16384
        $region52: #{tpu_custom_call.1} parent=47 // pred_fallthru
          _
        // Predicated region
        $region53: #{tpu_custom_call.1} parent=47 // pred_check
          %p311 = pneg %p73
        $region54: #{tpu_custom_call.1} parent=47 // pred_check_branch
          %313 = sbr.rel (%p311) target = $region56
        $region55: #{tpu_custom_call.1} parent=47 // pred_region
          %314 = dma.done [#allocation8], 4096
        $region56: #{tpu_custom_call.1} parent=47 // pred_fallthru
          _
        // Predicated region
        $region57: #{tpu_custom_call.1} parent=47 // pred_check
          %p315 = pneg %p94
        $region58: #{tpu_custom_call.1} parent=47 // pred_check_branch
          %317 = sbr.rel (%p315) target = $region60
        $region59: #{tpu_custom_call.1} parent=47 // pred_region
          %318 = dma.done [#allocation8], 5120
        $region60: #{tpu_custom_call.1} parent=47 // pred_fallthru
          _
        %s319 = sand.u32 %s24, 1
        %s320 = scalar_lea.sflag [#allocation11], %s319
        %s321 = sand.u32 %s128, 1
        %s322 = smul.addr %s321, 8
        %s323 = scalar_lea.vmem [#allocation10], %s322
        // Predicated region
        $region61: #{tpu_custom_call.1} parent=47 // pred_check
          %p324 = pneg %p141
        $region62: #{tpu_custom_call.1} parent=47 // pred_check_branch
          %326 = sbr.rel (%p324) target = $region64
        $region63: #{tpu_custom_call.1} parent=47 // pred_region
          %327 = dma.done %s320, 128
        $region64: #{tpu_custom_call.1} parent=47 // pred_fallthru
          _
        // Predicated region
        $region65: #{tpu_custom_call.1} parent=47 // pred_check
          %p328 = pneg %p162
        $region66: #{tpu_custom_call.1} parent=47 // pred_check_branch
          %330 = sbr.rel (%p328) target = $region68
        $region67: #{tpu_custom_call.1} parent=47 // pred_region
          %331 = dma.done [#allocation11], 2048
        $region68: #{tpu_custom_call.1} parent=47 // pred_fallthru
          _
        %p332 = pneg %p52
        %p333 = pneg %p49
        %p334 = pneg %p73
        %p335 = pneg %p70
        %p336 = pneg %p94
        %p337 = pneg %p91
        %p338 = pneg %p115
        %p339 = pneg %p112
        %s340 = sand.u32 %s24, 1
        %s341 = scalar_lea.sflag [#allocation11], %s340
        %s342 = sand.u32 %s128, 1
        %s343 = smul.addr %s342, 8
        %s344 = scalar_lea.vmem [#allocation10], %s343
        %p345 = pneg %p141
        %p346 = pneg %p138
        %p347 = pneg %p162
        %p348 = pneg %p159
        %p349 = pneg %p183
        %p350 = pneg %p180
        %p351 = pneg %p204
        %p352 = pneg %p201
        %s353 = smul.u32 2, %s29
        %p355 = scmp.eq.s32.totalorder %s28, 0
        %p356 = scmp.eq.s32.totalorder %s29, 0
        %p357 = pnand %p355, %p356
        %p358 = pneg %p357
        // Predicated region
        $region69: #{tpu_custom_call.1} parent=47 // pred_check
          _
        $region70: #{tpu_custom_call.1} parent=47 // pred_check_branch
          %360 = sbr.rel (%p357) target = $region72
        $region71: #{tpu_custom_call.1} parent=47 // pred_region
          %361 = vst [vmem:[#allocation13] sm:$0xff] 0.0
          %362 = vst [vmem:[#allocation3] sm:$0xff] 0.0
          %v363 = vld [vmem:[#allocation7] sm:$0xf]
          %v364 = vld [vmem:[#allocation7 + $0x4] sm:$0xf]
          %v365 = vld [vmem:[#allocation7 + $0x8] sm:$0xf]
          %v366 = vld [vmem:[#allocation7 + $0xc] sm:$0xf]
          %v367 = vld [vmem:[#allocation7 + $0x10] sm:$0xf]
          %v368 = vld [vmem:[#allocation7 + $0x14] sm:$0xf]
          %v369 = vld [vmem:[#allocation7 + $0x18] sm:$0xf]
          %v370 = vld [vmem:[#allocation7 + $0x1c] sm:$0xf]
          %v371 = vld [vmem:[#allocation7 + $0x20] sm:$0xf]
          %v372 = vld [vmem:[#allocation7 + $0x24] sm:$0xf]
          %v373 = vld [vmem:[#allocation7 + $0x28] sm:$0xf]
          %v374 = vld [vmem:[#allocation7 + $0x2c] sm:$0xf]
          %v375 = vld [vmem:[#allocation7 + $0x30] sm:$0xf]
          %v376 = vld [vmem:[#allocation7 + $0x34] sm:$0xf]
          %v377 = vld [vmem:[#allocation7 + $0x38] sm:$0xf]
          %v378 = vld [vmem:[#allocation7 + $0x3c] sm:$0xf]
          %v379 = vld [vmem:[#allocation7 + $0x40] sm:$0xf]
          %v380 = vld [vmem:[#allocation7 + $0x44] sm:$0xf]
          %v381 = vld [vmem:[#allocation7 + $0x48] sm:$0xf]
          %v382 = vld [vmem:[#allocation7 + $0x4c] sm:$0xf]
          %v383 = vld [vmem:[#allocation7 + $0x50] sm:$0xf]
          %v384 = vld [vmem:[#allocation7 + $0x54] sm:$0xf]
          %v385 = vld [vmem:[#allocation7 + $0x58] sm:$0xf]
          %v386 = vld [vmem:[#allocation7 + $0x5c] sm:$0xf]
          %v387 = vld [vmem:[#allocation7 + $0x60] sm:$0xf]
          %v388 = vld [vmem:[#allocation7 + $0x64] sm:$0xf]
          %v389 = vld [vmem:[#allocation7 + $0x68] sm:$0xf]
          %v390 = vld [vmem:[#allocation7 + $0x6c] sm:$0xf]
          %v391 = vld [vmem:[#allocation7 + $0x70] sm:$0xf]
          %v392 = vld [vmem:[#allocation7 + $0x74] sm:$0xf]
          %v393 = vld [vmem:[#allocation7 + $0x78] sm:$0xf]
          %v394 = vld [vmem:[#allocation7 + $0x7c] sm:$0xf]
          %v395 = vld [vmem:[#allocation7 + $0x80] sm:$0xf]
          %v396 = vld [vmem:[#allocation7 + $0x84] sm:$0xf]
          %v397 = vld [vmem:[#allocation7 + $0x88] sm:$0xf]
          %v398 = vld [vmem:[#allocation7 + $0x8c] sm:$0xf]
          %v399 = vld [vmem:[#allocation7 + $0x90] sm:$0xf]
          %v400 = vld [vmem:[#allocation7 + $0x94] sm:$0xf]
          %v401 = vld [vmem:[#allocation7 + $0x98] sm:$0xf]
          %v402 = vld [vmem:[#allocation7 + $0x9c] sm:$0xf]
          %v403 = vld [vmem:[#allocation7 + $0xa0] sm:$0xf]
          %v404 = vld [vmem:[#allocation7 + $0xa4] sm:$0xf]
          %v405 = vld [vmem:[#allocation7 + $0xa8] sm:$0xf]
          %v406 = vld [vmem:[#allocation7 + $0xac] sm:$0xf]
          %v407 = vld [vmem:[#allocation7 + $0xb0] sm:$0xf]
          %v408 = vld [vmem:[#allocation7 + $0xb4] sm:$0xf]
          %v409 = vld [vmem:[#allocation7 + $0xb8] sm:$0xf]
          %v410 = vld [vmem:[#allocation7 + $0xbc] sm:$0xf]
          %v411 = vld [vmem:[#allocation7 + $0xc0] sm:$0xf]
          %v412 = vld [vmem:[#allocation7 + $0xc4] sm:$0xf]
          %v413 = vld [vmem:[#allocation7 + $0xc8] sm:$0xf]
          %v414 = vld [vmem:[#allocation7 + $0xcc] sm:$0xf]
          %v415 = vld [vmem:[#allocation7 + $0xd0] sm:$0xf]
          %v416 = vld [vmem:[#allocation7 + $0xd4] sm:$0xf]
          %v417 = vld [vmem:[#allocation7 + $0xd8] sm:$0xf]
          %v418 = vld [vmem:[#allocation7 + $0xdc] sm:$0xf]
          %v419 = vld [vmem:[#allocation7 + $0xe0] sm:$0xf]
          %v420 = vld [vmem:[#allocation7 + $0xe4] sm:$0xf]
          %v421 = vld [vmem:[#allocation7 + $0xe8] sm:$0xf]
          %v422 = vld [vmem:[#allocation7 + $0xec] sm:$0xf]
          %v423 = vld [vmem:[#allocation7 + $0xf0] sm:$0xf]
          %v424 = vld [vmem:[#allocation7 + $0xf4] sm:$0xf]
          %v425 = vld [vmem:[#allocation7 + $0xf8] sm:$0xf]
          %v426 = vld [vmem:[#allocation7 + $0xfc] sm:$0xf]
          %v427 = vld [vmem:[#allocation9] sm:$0xf]
          %v428 = vld [vmem:[#allocation9 + $0x4] sm:$0xf]
          %v429 = vld [vmem:[#allocation9 + $0x8] sm:$0xf]
          %v430 = vld [vmem:[#allocation9 + $0xc] sm:$0xf]
          %v431 = vld [vmem:[#allocation9 + $0x10] sm:$0xf]
          %v432 = vld [vmem:[#allocation9 + $0x14] sm:$0xf]
          %v433 = vld [vmem:[#allocation9 + $0x18] sm:$0xf]
          %v434 = vld [vmem:[#allocation9 + $0x1c] sm:$0xf]
          %v435 = vld [vmem:[#allocation9 + $0x20] sm:$0xf]
          %v436 = vld [vmem:[#allocation9 + $0x24] sm:$0xf]
          %v437 = vld [vmem:[#allocation9 + $0x28] sm:$0xf]
          %v438 = vld [vmem:[#allocation9 + $0x2c] sm:$0xf]
          %v439 = vld [vmem:[#allocation9 + $0x30] sm:$0xf]
          %v440 = vld [vmem:[#allocation9 + $0x34] sm:$0xf]
          %v441 = vld [vmem:[#allocation9 + $0x38] sm:$0xf]
          %v442 = vld [vmem:[#allocation9 + $0x3c] sm:$0xf]
          %v507 = vunpack.c.l.b16 %v363
          %v508 = vunpack.c.l.b16 %v364
          %v509 = vunpack.c.l.b16 %v365
          %v510 = vunpack.c.l.b16 %v366
          %v511 = vunpack.c.l.b16 %v367
          %v512 = vunpack.c.l.b16 %v368
          %v513 = vunpack.c.l.b16 %v369
          %v514 = vunpack.c.l.b16 %v370
          %v515 = vunpack.c.l.b16 %v371
          %v516 = vunpack.c.l.b16 %v372
          %v517 = vunpack.c.l.b16 %v373
          %v518 = vunpack.c.l.b16 %v374
          %v519 = vunpack.c.l.b16 %v375
          %v520 = vunpack.c.l.b16 %v376
          %v521 = vunpack.c.l.b16 %v377
          %v522 = vunpack.c.l.b16 %v378
          %v523 = vunpack.c.l.b16 %v379
          %v524 = vunpack.c.l.b16 %v380
          %v525 = vunpack.c.l.b16 %v381
          %v526 = vunpack.c.l.b16 %v382
          %v527 = vunpack.c.l.b16 %v383
          %v528 = vunpack.c.l.b16 %v384
          %v529 = vunpack.c.l.b16 %v385
          %v530 = vunpack.c.l.b16 %v386
          %v531 = vunpack.c.l.b16 %v387
          %v532 = vunpack.c.l.b16 %v388
          %v533 = vunpack.c.l.b16 %v389
          %v534 = vunpack.c.l.b16 %v390
          %v535 = vunpack.c.l.b16 %v391
          %v536 = vunpack.c.l.b16 %v392
          %v537 = vunpack.c.l.b16 %v393
          %v538 = vunpack.c.l.b16 %v394
          %v539 = vunpack.c.l.b16 %v395
          %v540 = vunpack.c.l.b16 %v396
          %v541 = vunpack.c.l.b16 %v397
          %v542 = vunpack.c.l.b16 %v398
          %v543 = vunpack.c.l.b16 %v399
          %v544 = vunpack.c.l.b16 %v400
          %v545 = vunpack.c.l.b16 %v401
          %v546 = vunpack.c.l.b16 %v402
          %v547 = vunpack.c.l.b16 %v403
          %v548 = vunpack.c.l.b16 %v404
          %v549 = vunpack.c.l.b16 %v405
          %v550 = vunpack.c.l.b16 %v406
          %v551 = vunpack.c.l.b16 %v407
          %v552 = vunpack.c.l.b16 %v408
          %v553 = vunpack.c.l.b16 %v409
          %v554 = vunpack.c.l.b16 %v410
          %v555 = vunpack.c.l.b16 %v411
          %v556 = vunpack.c.l.b16 %v412
          %v557 = vunpack.c.l.b16 %v413
          %v558 = vunpack.c.l.b16 %v414
          %v559 = vunpack.c.l.b16 %v415
          %v560 = vunpack.c.l.b16 %v416
          %v561 = vunpack.c.l.b16 %v417
          %v562 = vunpack.c.l.b16 %v418
          %v563 = vunpack.c.l.b16 %v419
          %v564 = vunpack.c.l.b16 %v420
          %v565 = vunpack.c.l.b16 %v421
          %v566 = vunpack.c.l.b16 %v422
          %v567 = vunpack.c.l.b16 %v423
          %v568 = vunpack.c.l.b16 %v424
          %v569 = vunpack.c.l.b16 %v425
          %v570 = vunpack.c.l.b16 %v426
          %v571 = vpack.c.b16 %v508, %v507
          %v572 = vpack.c.b16 %v510, %v509
          %v573 = vpack.c.b16 %v512, %v511
          %v574 = vpack.c.b16 %v514, %v513
          %v575 = vpack.c.b16 %v516, %v515
          %v576 = vpack.c.b16 %v518, %v517
          %v577 = vpack.c.b16 %v520, %v519
          %v578 = vpack.c.b16 %v522, %v521
          %v579 = vpack.c.b16 %v524, %v523
          %v580 = vpack.c.b16 %v526, %v525
          %v581 = vpack.c.b16 %v528, %v527
          %v582 = vpack.c.b16 %v530, %v529
          %v583 = vpack.c.b16 %v532, %v531
          %v584 = vpack.c.b16 %v534, %v533
          %v585 = vpack.c.b16 %v536, %v535
          %v586 = vpack.c.b16 %v538, %v537
          %v587 = vpack.c.b16 %v540, %v539
          %v588 = vpack.c.b16 %v542, %v541
          %v589 = vpack.c.b16 %v544, %v543
          %v590 = vpack.c.b16 %v546, %v545
          %v591 = vpack.c.b16 %v548, %v547
          %v592 = vpack.c.b16 %v550, %v549
          %v593 = vpack.c.b16 %v552, %v551
          %v594 = vpack.c.b16 %v554, %v553
          %v595 = vpack.c.b16 %v556, %v555
          %v596 = vpack.c.b16 %v558, %v557
          %v597 = vpack.c.b16 %v560, %v559
          %v598 = vpack.c.b16 %v562, %v561
          %v599 = vpack.c.b16 %v564, %v563
          %v600 = vpack.c.b16 %v566, %v565
          %v601 = vpack.c.b16 %v568, %v567
          %v602 = vpack.c.b16 %v570, %v569
          %v651 = vunpack.c.l.b16 %v427
          %v652 = vunpack.c.l.b16 %v428
          %v653 = vunpack.c.l.b16 %v429
          %v654 = vunpack.c.l.b16 %v430
          %v655 = vunpack.c.l.b16 %v431
          %v656 = vunpack.c.l.b16 %v432
          %v657 = vunpack.c.l.b16 %v433
          %v658 = vunpack.c.l.b16 %v434
          %v659 = vunpack.c.l.b16 %v435
          %v660 = vunpack.c.l.b16 %v436
          %v661 = vunpack.c.l.b16 %v437
          %v662 = vunpack.c.l.b16 %v438
          %v663 = vunpack.c.l.b16 %v439
          %v664 = vunpack.c.l.b16 %v440
          %v665 = vunpack.c.l.b16 %v441
          %v666 = vunpack.c.l.b16 %v442
          %v667 = vpack.c.b16 %v652, %v651
          %v668 = vpack.c.b16 %v654, %v653
          %v669 = vpack.c.b16 %v656, %v655
          %v670 = vpack.c.b16 %v658, %v657
          %v671 = vpack.c.b16 %v660, %v659
          %v672 = vpack.c.b16 %v662, %v661
          %v673 = vpack.c.b16 %v664, %v663
          %v674 = vpack.c.b16 %v666, %v665
          %683 = vmatprep.subr.bf16.mxu0 0
          %684 = vmatpush1.bf16.msra.mxu0 %v667
          %685 = vmatprep.subr.bf16.mxu0 0
          %686 = vmatpush1.bf16.msra.mxu0 %v668
          %687 = vmatprep.subr.bf16.mxu0 0
          %688 = vmatpush1.bf16.msra.mxu0 %v669
          %689 = vmatprep.subr.bf16.mxu0 0
          %690 = vmatpush1.bf16.msra.mxu0 %v670
          %691 = vmatprep.subr.bf16.mxu0 0
          %692 = vmatpush1.bf16.msra.mxu0 %v671
          %693 = vmatprep.subr.bf16.mxu0 0
          %694 = vmatpush1.bf16.msra.mxu0 %v672
          %695 = vmatprep.subr.bf16.mxu0 0
          %696 = vmatpush1.bf16.msra.mxu0 %v673
          %697 = vmatprep.subr.bf16.mxu0 0
          %698 = vmatpush1.bf16.msra.mxu0 %v674
          %699 = vmatprep.subr.bf16.mxu0 0
          %700 = vmatpush1.bf16.msra.mxu0 0
          %701 = vmatprep.subr.bf16.mxu0 0
          %702 = vmatpush1.bf16.msra.mxu0 0
          %703 = vmatprep.subr.bf16.mxu0 0
          %704 = vmatpush1.bf16.msra.mxu0 0
          %705 = vmatprep.subr.bf16.mxu0 0
          %706 = vmatpush1.bf16.msra.mxu0 0
          %707 = vmatprep.subr.bf16.mxu0 0
          %708 = vmatpush1.bf16.msra.mxu0 0
          %709 = vmatprep.subr.bf16.mxu0 0
          %710 = vmatpush1.bf16.msra.mxu0 0
          %711 = vmatprep.subr.bf16.mxu0 0
          %712 = vmatpush1.bf16.msra.mxu0 0
          %713 = vmatprep.subr.bf16.mxu0 0
          %714 = vmatpush1.bf16.msra.mxu0 0
          %715 = vmatprep.mubr.bf16.mxu0 0
          %716 = vmatmul.mubr.bf16.gmra.mrb[0].mxu0 %v571
          %v717 = vpop.f32.mrb[0].mxu0
          %v718 = vadd.f32 0.0, %v717
          %v719 = vpop.f32.mrb[0].mxu0
          %v720 = vpop.f32.mrb[0].mxu0
          %v721 = vadd.f32 0.0, %v720
          %v722 = vpop.f32.mrb[0].mxu0
          %723 = vmatprep.mubr.bf16.mxu0 0
          %724 = vmatmul.mubr.bf16.gmra.mrb[0].mxu0 %v572
          %v725 = vpop.f32.mrb[0].mxu0
          %v726 = vadd.f32 0.0, %v725
          %v727 = vpop.f32.mrb[0].mxu0
          %v728 = vpop.f32.mrb[0].mxu0
          %v729 = vadd.f32 0.0, %v728
          %v730 = vpop.f32.mrb[0].mxu0
          %731 = vmatprep.mubr.bf16.mxu0 0
          %732 = vmatmul.mubr.bf16.gmra.mrb[0].mxu0 %v573
          %v733 = vpop.f32.mrb[0].mxu0
          %v734 = vadd.f32 0.0, %v733
          %v735 = vpop.f32.mrb[0].mxu0
          %v736 = vpop.f32.mrb[0].mxu0
          %v737 = vadd.f32 0.0, %v736
          %v738 = vpop.f32.mrb[0].mxu0
          %739 = vmatprep.mubr.bf16.mxu0 0
          %740 = vmatmul.mubr.bf16.gmra.mrb[0].mxu0 %v574
          %v741 = vpop.f32.mrb[0].mxu0
          %v742 = vadd.f32 0.0, %v741
          %v743 = vpop.f32.mrb[0].mxu0
          %v744 = vpop.f32.mrb[0].mxu0
          %v745 = vadd.f32 0.0, %v744
          %v746 = vpop.f32.mrb[0].mxu0
          %747 = vmatprep.mubr.bf16.mxu0 0
          %748 = vmatmul.mubr.bf16.gmra.mrb[0].mxu0 %v575
          %v749 = vpop.f32.mrb[0].mxu0
          %v750 = vadd.f32 0.0, %v749
          %v751 = vpop.f32.mrb[0].mxu0
          %v752 = vpop.f32.mrb[0].mxu0
          %v753 = vadd.f32 0.0, %v752
          %v754 = vpop.f32.mrb[0].mxu0
          %755 = vmatprep.mubr.bf16.mxu0 0
          %756 = vmatmul.mubr.bf16.gmra.mrb[0].mxu0 %v576
          %v757 = vpop.f32.mrb[0].mxu0
          %v758 = vadd.f32 0.0, %v757
          %v759 = vpop.f32.mrb[0].mxu0
          %v760 = vpop.f32.mrb[0].mxu0
          %v761 = vadd.f32 0.0, %v760
          %v762 = vpop.f32.mrb[0].mxu0
          %763 = vmatprep.mubr.bf16.mxu0 0
          %764 = vmatmul.mubr.bf16.gmra.mrb[0].mxu0 %v577
          %v765 = vpop.f32.mrb[0].mxu0
          %v766 = vadd.f32 0.0, %v765
          %v767 = vpop.f32.mrb[0].mxu0
          %v768 = vpop.f32.mrb[0].mxu0
          %v769 = vadd.f32 0.0, %v768
          %v770 = vpop.f32.mrb[0].mxu0
          %771 = vmatprep.mubr.bf16.mxu0 0
          %772 = vmatmul.mubr.bf16.gmra.mrb[0].mxu0 %v578
          %v773 = vpop.f32.mrb[0].mxu0
          %v774 = vadd.f32 0.0, %v773
          %v775 = vpop.f32.mrb[0].mxu0
          %v776 = vpop.f32.mrb[0].mxu0
          %v777 = vadd.f32 0.0, %v776
          %v778 = vpop.f32.mrb[0].mxu0
          %779 = vmatprep.mubr.bf16.mxu0 0
          %780 = vmatmul.mubr.bf16.gmra.mrb[0].mxu0 %v579
          %v781 = vpop.f32.mrb[0].mxu0
          %v782 = vadd.f32 0.0, %v781
          %v783 = vpop.f32.mrb[0].mxu0
          %v784 = vpop.f32.mrb[0].mxu0
          %v785 = vadd.f32 0.0, %v784
          %v786 = vpop.f32.mrb[0].mxu0
          %787 = vmatprep.mubr.bf16.mxu0 0
          %788 = vmatmul.mubr.bf16.gmra.mrb[0].mxu0 %v580
          %v789 = vpop.f32.mrb[0].mxu0
          %v790 = vadd.f32 0.0, %v789
          %v791 = vpop.f32.mrb[0].mxu0
          %v792 = vpop.f32.mrb[0].mxu0
          %v793 = vadd.f32 0.0, %v792
          %v794 = vpop.f32.mrb[0].mxu0
          %795 = vmatprep.mubr.bf16.mxu0 0
          %796 = vmatmul.mubr.bf16.gmra.mrb[0].mxu0 %v581
          %v797 = vpop.f32.mrb[0].mxu0
          %v798 = vadd.f32 0.0, %v797
          %v799 = vpop.f32.mrb[0].mxu0
          %v800 = vpop.f32.mrb[0].mxu0
          %v801 = vadd.f32 0.0, %v800
          %v802 = vpop.f32.mrb[0].mxu0
          %803 = vmatprep.mubr.bf16.mxu0 0
          %804 = vmatmul.mubr.bf16.gmra.mrb[0].mxu0 %v582
          %v805 = vpop.f32.mrb[0].mxu0
          %v806 = vadd.f32 0.0, %v805
          %v807 = vpop.f32.mrb[0].mxu0
          %v808 = vpop.f32.mrb[0].mxu0
          %v809 = vadd.f32 0.0, %v808
          %v810 = vpop.f32.mrb[0].mxu0
          %811 = vmatprep.mubr.bf16.mxu0 0
          %812 = vmatmul.mubr.bf16.gmra.mrb[0].mxu0 %v583
          %v813 = vpop.f32.mrb[0].mxu0
          %v814 = vadd.f32 0.0, %v813
          %v815 = vpop.f32.mrb[0].mxu0
          %v816 = vpop.f32.mrb[0].mxu0
          %v817 = vadd.f32 0.0, %v816
          %v818 = vpop.f32.mrb[0].mxu0
          %819 = vmatprep.mubr.bf16.mxu0 0
          %820 = vmatmul.mubr.bf16.gmra.mrb[0].mxu0 %v584
          %v821 = vpop.f32.mrb[0].mxu0
          %v822 = vadd.f32 0.0, %v821
          %v823 = vpop.f32.mrb[0].mxu0
          %v824 = vpop.f32.mrb[0].mxu0
          %v825 = vadd.f32 0.0, %v824
          %v826 = vpop.f32.mrb[0].mxu0
          %827 = vmatprep.mubr.bf16.mxu0 0
          %828 = vmatmul.mubr.bf16.gmra.mrb[0].mxu0 %v585
          %v829 = vpop.f32.mrb[0].mxu0
          %v830 = vadd.f32 0.0, %v829
          %v831 = vpop.f32.mrb[0].mxu0
          %v832 = vpop.f32.mrb[0].mxu0
          %v833 = vadd.f32 0.0, %v832
          %v834 = vpop.f32.mrb[0].mxu0
          %835 = vmatprep.mubr.bf16.mxu0 0
          %836 = vmatmul.mubr.bf16.gmra.mrb[0].mxu0 %v586
          %v837 = vpop.f32.mrb[0].mxu0
          %v838 = vadd.f32 0.0, %v837
          %v839 = vpop.f32.mrb[0].mxu0
          %v840 = vpop.f32.mrb[0].mxu0
          %v841 = vadd.f32 0.0, %v840
          %v842 = vpop.f32.mrb[0].mxu0
          %843 = vmatprep.mubr.bf16.mxu0 0
          %844 = vmatmul.mubr.bf16.gmra.mrb[0].mxu0 %v587
          %v845 = vpop.f32.mrb[0].mxu0
          %v846 = vadd.f32 0.0, %v845
          %v847 = vpop.f32.mrb[0].mxu0
          %v848 = vpop.f32.mrb[0].mxu0
          %v849 = vadd.f32 0.0, %v848
          %v850 = vpop.f32.mrb[0].mxu0
          %851 = vmatprep.mubr.bf16.mxu0 0
          %852 = vmatmul.mubr.bf16.gmra.mrb[0].mxu0 %v588
          %v853 = vpop.f32.mrb[0].mxu0
          %v854 = vadd.f32 0.0, %v853
          %v855 = vpop.f32.mrb[0].mxu0
          %v856 = vpop.f32.mrb[0].mxu0
          %v857 = vadd.f32 0.0, %v856
          %v858 = vpop.f32.mrb[0].mxu0
          %859 = vmatprep.mubr.bf16.mxu0 0
          %860 = vmatmul.mubr.bf16.gmra.mrb[0].mxu0 %v589
          %v861 = vpop.f32.mrb[0].mxu0
          %v862 = vadd.f32 0.0, %v861
          %v863 = vpop.f32.mrb[0].mxu0
          %v864 = vpop.f32.mrb[0].mxu0
          %v865 = vadd.f32 0.0, %v864
          %v866 = vpop.f32.mrb[0].mxu0
          %867 = vmatprep.mubr.bf16.mxu0 0
          %868 = vmatmul.mubr.bf16.gmra.mrb[0].mxu0 %v590
          %v869 = vpop.f32.mrb[0].mxu0
          %v870 = vadd.f32 0.0, %v869
          %v871 = vpop.f32.mrb[0].mxu0
          %v872 = vpop.f32.mrb[0].mxu0
          %v873 = vadd.f32 0.0, %v872
          %v874 = vpop.f32.mrb[0].mxu0
          %875 = vmatprep.mubr.bf16.mxu0 0
          %876 = vmatmul.mubr.bf16.gmra.mrb[0].mxu0 %v591
          %v877 = vpop.f32.mrb[0].mxu0
          %v878 = vadd.f32 0.0, %v877
          %v879 = vpop.f32.mrb[0].mxu0
          %v880 = vpop.f32.mrb[0].mxu0
          %v881 = vadd.f32 0.0, %v880
          %v882 = vpop.f32.mrb[0].mxu0
          %883 = vmatprep.mubr.bf16.mxu0 0
          %884 = vmatmul.mubr.bf16.gmra.mrb[0].mxu0 %v592
          %v885 = vpop.f32.mrb[0].mxu0
          %v886 = vadd.f32 0.0, %v885
          %v887 = vpop.f32.mrb[0].mxu0
          %v888 = vpop.f32.mrb[0].mxu0
          %v889 = vadd.f32 0.0, %v888
          %v890 = vpop.f32.mrb[0].mxu0
          %891 = vmatprep.mubr.bf16.mxu0 0
          %892 = vmatmul.mubr.bf16.gmra.mrb[0].mxu0 %v593
          %v893 = vpop.f32.mrb[0].mxu0
          %v894 = vadd.f32 0.0, %v893
          %v895 = vpop.f32.mrb[0].mxu0
          %v896 = vpop.f32.mrb[0].mxu0
          %v897 = vadd.f32 0.0, %v896
          %v898 = vpop.f32.mrb[0].mxu0
          %899 = vmatprep.mubr.bf16.mxu0 0
          %900 = vmatmul.mubr.bf16.gmra.mrb[0].mxu0 %v594
          %v901 = vpop.f32.mrb[0].mxu0
          %v902 = vadd.f32 0.0, %v901
          %v903 = vpop.f32.mrb[0].mxu0
          %v904 = vpop.f32.mrb[0].mxu0
          %v905 = vadd.f32 0.0, %v904
          %v906 = vpop.f32.mrb[0].mxu0
          %907 = vmatprep.mubr.bf16.mxu0 0
          %908 = vmatmul.mubr.bf16.gmra.mrb[0].mxu0 %v595
          %v909 = vpop.f32.mrb[0].mxu0
          %v910 = vadd.f32 0.0, %v909
          %v911 = vpop.f32.mrb[0].mxu0
          %v912 = vpop.f32.mrb[0].mxu0
          %v913 = vadd.f32 0.0, %v912
          %v914 = vpop.f32.mrb[0].mxu0
          %915 = vmatprep.mubr.bf16.mxu0 0
          %916 = vmatmul.mubr.bf16.gmra.mrb[0].mxu0 %v596
          %v917 = vpop.f32.mrb[0].mxu0
          %v918 = vadd.f32 0.0, %v917
          %v919 = vpop.f32.mrb[0].mxu0
          %v920 = vpop.f32.mrb[0].mxu0
          %v921 = vadd.f32 0.0, %v920
          %v922 = vpop.f32.mrb[0].mxu0
          %923 = vmatprep.mubr.bf16.mxu0 0
          %924 = vmatmul.mubr.bf16.gmra.mrb[0].mxu0 %v597
          %v925 = vpop.f32.mrb[0].mxu0
          %v926 = vadd.f32 0.0, %v925
          %v927 = vpop.f32.mrb[0].mxu0
          %v928 = vpop.f32.mrb[0].mxu0
          %v929 = vadd.f32 0.0, %v928
          %v930 = vpop.f32.mrb[0].mxu0
          %931 = vmatprep.mubr.bf16.mxu0 0
          %932 = vmatmul.mubr.bf16.gmra.mrb[0].mxu0 %v598
          %v933 = vpop.f32.mrb[0].mxu0
          %v934 = vadd.f32 0.0, %v933
          %v935 = vpop.f32.mrb[0].mxu0
          %v936 = vpop.f32.mrb[0].mxu0
          %v937 = vadd.f32 0.0, %v936
          %v938 = vpop.f32.mrb[0].mxu0
          %939 = vmatprep.mubr.bf16.mxu0 0
          %940 = vmatmul.mubr.bf16.gmra.mrb[0].mxu0 %v599
          %v941 = vpop.f32.mrb[0].mxu0
          %v942 = vadd.f32 0.0, %v941
          %v943 = vpop.f32.mrb[0].mxu0
          %v944 = vpop.f32.mrb[0].mxu0
          %v945 = vadd.f32 0.0, %v944
          %v946 = vpop.f32.mrb[0].mxu0
          %947 = vmatprep.mubr.bf16.mxu0 0
          %948 = vmatmul.mubr.bf16.gmra.mrb[0].mxu0 %v600
          %v949 = vpop.f32.mrb[0].mxu0
          %v950 = vadd.f32 0.0, %v949
          %v951 = vpop.f32.mrb[0].mxu0
          %v952 = vpop.f32.mrb[0].mxu0
          %v953 = vadd.f32 0.0, %v952
          %v954 = vpop.f32.mrb[0].mxu0
          %955 = vmatprep.mubr.bf16.mxu0 0
          %956 = vmatmul.mubr.bf16.gmra.mrb[0].mxu0 %v601
          %v957 = vpop.f32.mrb[0].mxu0
          %v958 = vadd.f32 0.0, %v957
          %v959 = vpop.f32.mrb[0].mxu0
          %v960 = vpop.f32.mrb[0].mxu0
          %v961 = vadd.f32 0.0, %v960
          %v962 = vpop.f32.mrb[0].mxu0
          %963 = vmatprep.mubr.bf16.mxu0 0
          %964 = vmatmul.mubr.bf16.gmra.mrb[0].mxu0 %v602
          %v965 = vpop.f32.mrb[0].mxu0
          %v966 = vadd.f32 0.0, %v965
          %v967 = vpop.f32.mrb[0].mxu0
          %v968 = vpop.f32.mrb[0].mxu0
          %v969 = vadd.f32 0.0, %v968
          %v970 = vpop.f32.mrb[0].mxu0
          %971 = vdwg.mxu0
          %v972 = vpack.c.bf16 %v721, %v718
          %v973 = vpack.c.bf16 %v729, %v726
          %v974 = vpack.c.bf16 %v737, %v734
          %v975 = vpack.c.bf16 %v745, %v742
          %v976 = vpack.c.bf16 %v753, %v750
          %v977 = vpack.c.bf16 %v761, %v758
          %v978 = vpack.c.bf16 %v769, %v766
          %v979 = vpack.c.bf16 %v777, %v774
          %v980 = vpack.c.bf16 %v785, %v782
          %v981 = vpack.c.bf16 %v793, %v790
          %v982 = vpack.c.bf16 %v801, %v798
          %v983 = vpack.c.bf16 %v809, %v806
          %v984 = vpack.c.bf16 %v817, %v814
          %v985 = vpack.c.bf16 %v825, %v822
          %v986 = vpack.c.bf16 %v833, %v830
          %v987 = vpack.c.bf16 %v841, %v838
          %v988 = vpack.c.bf16 %v849, %v846
          %v989 = vpack.c.bf16 %v857, %v854
          %v990 = vpack.c.bf16 %v865, %v862
          %v991 = vpack.c.bf16 %v873, %v870
          %v992 = vpack.c.bf16 %v881, %v878
          %v993 = vpack.c.bf16 %v889, %v886
          %v994 = vpack.c.bf16 %v897, %v894
          %v995 = vpack.c.bf16 %v905, %v902
          %v996 = vpack.c.bf16 %v913, %v910
          %v997 = vpack.c.bf16 %v921, %v918
          %v998 = vpack.c.bf16 %v929, %v926
          %v999 = vpack.c.bf16 %v937, %v934
          %v1000 = vpack.c.bf16 %v945, %v942
          %v1001 = vpack.c.bf16 %v953, %v950
          %v1002 = vpack.c.bf16 %v961, %v958
          %v1003 = vpack.c.bf16 %v969, %v966
          %s1004 = scalar_lea.vmem [#allocation2], 256
          %1005 = vst [vmem:[%s1004] sm:$0xff] %v972
          %1006 = vst [vmem:[%s1004 + $0x8] sm:$0xff] %v973
          %1007 = vst [vmem:[%s1004 + $0x10] sm:$0xff] %v974
          %1008 = vst [vmem:[%s1004 + $0x18] sm:$0xff] %v975
          %1009 = vst [vmem:[%s1004 + $0x20] sm:$0xff] %v976
          %1010 = vst [vmem:[%s1004 + $0x28] sm:$0xff] %v977
          %1011 = vst [vmem:[%s1004 + $0x30] sm:$0xff] %v978
          %1012 = vst [vmem:[%s1004 + $0x38] sm:$0xff] %v979
          %1013 = vst [vmem:[%s1004 + $0x40] sm:$0xff] %v980
          %1014 = vst [vmem:[%s1004 + $0x48] sm:$0xff] %v981
          %1015 = vst [vmem:[%s1004 + $0x50] sm:$0xff] %v982
          %1016 = vst [vmem:[%s1004 + $0x58] sm:$0xff] %v983
          %1017 = vst [vmem:[%s1004 + $0x60] sm:$0xff] %v984
          %1018 = vst [vmem:[%s1004 + $0x68] sm:$0xff] %v985
          %1019 = vst [vmem:[%s1004 + $0x70] sm:$0xff] %v986
          %1020 = vst [vmem:[%s1004 + $0x78] sm:$0xff] %v987
          %1021 = vst [vmem:[%s1004 + $0x80] sm:$0xff] %v988
          %1022 = vst [vmem:[%s1004 + $0x88] sm:$0xff] %v989
          %1023 = vst [vmem:[%s1004 + $0x90] sm:$0xff] %v990
          %1024 = vst [vmem:[%s1004 + $0x98] sm:$0xff] %v991
          %1025 = vst [vmem:[%s1004 + $0xa0] sm:$0xff] %v992
          %1026 = vst [vmem:[%s1004 + $0xa8] sm:$0xff] %v993
          %1027 = vst [vmem:[%s1004 + $0xb0] sm:$0xff] %v994
          %1028 = vst [vmem:[%s1004 + $0xb8] sm:$0xff] %v995
          %1029 = vst [vmem:[%s1004 + $0xc0] sm:$0xff] %v996
          %1030 = vst [vmem:[%s1004 + $0xc8] sm:$0xff] %v997
          %1031 = vst [vmem:[%s1004 + $0xd0] sm:$0xff] %v998
          %1032 = vst [vmem:[%s1004 + $0xd8] sm:$0xff] %v999
          %1033 = vst [vmem:[%s1004 + $0xe0] sm:$0xff] %v1000
          %1034 = vst [vmem:[%s1004 + $0xe8] sm:$0xff] %v1001
          %1035 = vst [vmem:[%s1004 + $0xf0] sm:$0xff] %v1002
          %1036 = vst [vmem:[%s1004 + $0xf8] sm:$0xff] %v1003
        $region72: #{tpu_custom_call.1} parent=47 // pred_fallthru
          _
        %s1037 = sadd.s32 %s28, 1
        %p1038 = scmp.lt.s32.totalorder %s1037, 0
        %s1039 = ssub.s32 0, %s1037
        %s1040 = scalar_select %p1038, %s1039, %s1037
        %s1041 = sand.u32 %s1040, 1
        %s1042 = ssub.s32 0, %s1041
        %s1043 = scalar_select %p1038, %s1042, %s1041
        %p1044 = scmp.ne.s32.totalorder %s1043, 0
        %p1045 = scmp.lt.s32.totalorder %s1043, 0
        %p1046 = pnand %p1045, %p1044
        %p1047 = pneg %p1046
        %s1048 = sadd.s32 %s1043, 2
        %s1049 = scalar_select %p1047, %s1048, %s1043
        %p1050 = scmp.lt.s32.totalorder %s28, 0
        %s1051 = ssub.s32 0, %s28
        %s1052 = scalar_select %p1050, %s1051, %s28
        %s1053 = sand.u32 %s1052, 1
        %s1054 = ssub.s32 0, %s1053
        %s1055 = scalar_select %p1050, %s1054, %s1053
        %p1056 = scmp.ne.s32.totalorder %s1055, 0
        %p1057 = scmp.lt.s32.totalorder %s1055, 0
        %p1058 = pnand %p1057, %p1056
        %p1059 = pneg %p1058
        %s1060 = sadd.s32 %s1055, 2
        %s1061 = scalar_select %p1059, %s1060, %s1055
        %s1062 = smul.u32 %s29, 256
        %s1063 = sshra.s32 %s1062, 3
        %s1064 = sand.u32 %s1062, 7
        %s1065 = smul.u32 %s1063, 4
        %s1066 = smul.addr %s1065, 4
        %s1067 = scalar_lea.vmem [#allocation4], %s1066
        %v1068 = vld [vmem:[%s1067] sm:$0xff]
        %v1069 = vld [vmem:[%s1067 + $0x8] sm:$0xff]
        %v1070 = vld [vmem:[%s1067 + $0x10] sm:$0xff]
        %v1071 = vld [vmem:[%s1067 + $0x18] sm:$0xff]
        %v1072 = vld [vmem:[%s1067 + $0x20] sm:$0xff]
        %v1073 = vld [vmem:[%s1067 + $0x28] sm:$0xff]
        %v1074 = vld [vmem:[%s1067 + $0x30] sm:$0xff]
        %v1075 = vld [vmem:[%s1067 + $0x38] sm:$0xff]
        %v1076 = vld [vmem:[%s1067 + $0x40] sm:$0xff]
        %v1077 = vld [vmem:[%s1067 + $0x48] sm:$0xff]
        %v1078 = vld [vmem:[%s1067 + $0x50] sm:$0xff]
        %v1079 = vld [vmem:[%s1067 + $0x58] sm:$0xff]
        %v1080 = vld [vmem:[%s1067 + $0x60] sm:$0xff]
        %v1081 = vld [vmem:[%s1067 + $0x68] sm:$0xff]
        %v1082 = vld [vmem:[%s1067 + $0x70] sm:$0xff]
        %v1083 = vld [vmem:[%s1067 + $0x78] sm:$0xff]
        %v1084 = vld [vmem:[%s1067 + $0x80] sm:$0xff]
        %v1085 = vld [vmem:[%s1067 + $0x88] sm:$0xff]
        %v1086 = vld [vmem:[%s1067 + $0x90] sm:$0xff]
        %v1087 = vld [vmem:[%s1067 + $0x98] sm:$0xff]
        %v1088 = vld [vmem:[%s1067 + $0xa0] sm:$0xff]
        %v1089 = vld [vmem:[%s1067 + $0xa8] sm:$0xff]
        %v1090 = vld [vmem:[%s1067 + $0xb0] sm:$0xff]
        %v1091 = vld [vmem:[%s1067 + $0xb8] sm:$0xff]
        %v1092 = vld [vmem:[%s1067 + $0xc0] sm:$0xff]
        %v1093 = vld [vmem:[%s1067 + $0xc8] sm:$0xff]
        %v1094 = vld [vmem:[%s1067 + $0xd0] sm:$0xff]
        %v1095 = vld [vmem:[%s1067 + $0xd8] sm:$0xff]
        %v1096 = vld [vmem:[%s1067 + $0xe0] sm:$0xff]
        %v1097 = vld [vmem:[%s1067 + $0xe8] sm:$0xff]
        %v1098 = vld [vmem:[%s1067 + $0xf0] sm:$0xff]
        %v1099 = vld [vmem:[%s1067 + $0xf8] sm:$0xff]
        %v1100 = vld [vmem:[%s1067 + $0x100] sm:$0xff]
        %v1101 = vld [vmem:[%s1067 + $0x108] sm:$0xff]
        %v1102 = vld [vmem:[%s1067 + $0x110] sm:$0xff]
        %v1103 = vld [vmem:[%s1067 + $0x118] sm:$0xff]
        %v1104 = vld [vmem:[%s1067 + $0x120] sm:$0xff]
        %v1105 = vld [vmem:[%s1067 + $0x128] sm:$0xff]
        %v1106 = vld [vmem:[%s1067 + $0x130] sm:$0xff]
        %v1107 = vld [vmem:[%s1067 + $0x138] sm:$0xff]
        %v1108 = vld [vmem:[%s1067 + $0x140] sm:$0xff]
        %v1109 = vld [vmem:[%s1067 + $0x148] sm:$0xff]
        %v1110 = vld [vmem:[%s1067 + $0x150] sm:$0xff]
        %v1111 = vld [vmem:[%s1067 + $0x158] sm:$0xff]
        %v1112 = vld [vmem:[%s1067 + $0x160] sm:$0xff]
        %v1113 = vld [vmem:[%s1067 + $0x168] sm:$0xff]
        %v1114 = vld [vmem:[%s1067 + $0x170] sm:$0xff]
        %v1115 = vld [vmem:[%s1067 + $0x178] sm:$0xff]
        %v1116 = vld [vmem:[%s1067 + $0x180] sm:$0xff]
        %v1117 = vld [vmem:[%s1067 + $0x188] sm:$0xff]
        %v1118 = vld [vmem:[%s1067 + $0x190] sm:$0xff]
        %v1119 = vld [vmem:[%s1067 + $0x198] sm:$0xff]
        %v1120 = vld [vmem:[%s1067 + $0x1a0] sm:$0xff]
        %v1121 = vld [vmem:[%s1067 + $0x1a8] sm:$0xff]
        %v1122 = vld [vmem:[%s1067 + $0x1b0] sm:$0xff]
        %v1123 = vld [vmem:[%s1067 + $0x1b8] sm:$0xff]
        %v1124 = vld [vmem:[%s1067 + $0x1c0] sm:$0xff]
        %v1125 = vld [vmem:[%s1067 + $0x1c8] sm:$0xff]
        %v1126 = vld [vmem:[%s1067 + $0x1d0] sm:$0xff]
        %v1127 = vld [vmem:[%s1067 + $0x1d8] sm:$0xff]
        %v1128 = vld [vmem:[%s1067 + $0x1e0] sm:$0xff]
        %v1129 = vld [vmem:[%s1067 + $0x1e8] sm:$0xff]
        %v1130 = vld [vmem:[%s1067 + $0x1f0] sm:$0xff]
        %v1131 = vld [vmem:[%s1067 + $0x1f8] sm:$0xff]
        %s1132 = smul.u32 %s1049, 32
        %s1133 = smul.addr %s1132, 8
        %s1134 = scalar_lea.vmem [#allocation2], %s1133
        %v1135 = vld [vmem:[%s1134] sm:$0xff]
        %v1136 = vld [vmem:[%s1134 + $0x8] sm:$0xff]
        %v1137 = vld [vmem:[%s1134 + $0x10] sm:$0xff]
        %v1138 = vld [vmem:[%s1134 + $0x18] sm:$0xff]
        %v1139 = vld [vmem:[%s1134 + $0x20] sm:$0xff]
        %v1140 = vld [vmem:[%s1134 + $0x28] sm:$0xff]
        %v1141 = vld [vmem:[%s1134 + $0x30] sm:$0xff]
        %v1142 = vld [vmem:[%s1134 + $0x38] sm:$0xff]
        %v1143 = vld [vmem:[%s1134 + $0x40] sm:$0xff]
        %v1144 = vld [vmem:[%s1134 + $0x48] sm:$0xff]
        %v1145 = vld [vmem:[%s1134 + $0x50] sm:$0xff]
        %v1146 = vld [vmem:[%s1134 + $0x58] sm:$0xff]
        %v1147 = vld [vmem:[%s1134 + $0x60] sm:$0xff]
        %v1148 = vld [vmem:[%s1134 + $0x68] sm:$0xff]
        %v1149 = vld [vmem:[%s1134 + $0x70] sm:$0xff]
        %v1150 = vld [vmem:[%s1134 + $0x78] sm:$0xff]
        %v1151 = vld [vmem:[%s1134 + $0x80] sm:$0xff]
        %v1152 = vld [vmem:[%s1134 + $0x88] sm:$0xff]
        %v1153 = vld [vmem:[%s1134 + $0x90] sm:$0xff]
        %v1154 = vld [vmem:[%s1134 + $0x98] sm:$0xff]
        %v1155 = vld [vmem:[%s1134 + $0xa0] sm:$0xff]
        %v1156 = vld [vmem:[%s1134 + $0xa8] sm:$0xff]
        %v1157 = vld [vmem:[%s1134 + $0xb0] sm:$0xff]
        %v1158 = vld [vmem:[%s1134 + $0xb8] sm:$0xff]
        %v1159 = vld [vmem:[%s1134 + $0xc0] sm:$0xff]
        %v1160 = vld [vmem:[%s1134 + $0xc8] sm:$0xff]
        %v1161 = vld [vmem:[%s1134 + $0xd0] sm:$0xff]
        %v1162 = vld [vmem:[%s1134 + $0xd8] sm:$0xff]
        %v1163 = vld [vmem:[%s1134 + $0xe0] sm:$0xff]
        %v1164 = vld [vmem:[%s1134 + $0xe8] sm:$0xff]
        %v1165 = vld [vmem:[%s1134 + $0xf0] sm:$0xff]
        %v1166 = vld [vmem:[%s1134 + $0xf8] sm:$0xff]
        %s1167 = scalar_lea.vmem %s3, %s28
        %v1168 = vld [vmem:[%s1167] sm:$0x1]
        %v1170 = vlaneseq
        %v1171 = vshrl.u32 %v1170, 7
        %v1172 = vsub.s32 0, %v1171
        %v1173 = vrot.slane %v1168, %v1172
        %v1239 = vunpack.c.l.b16 %v1068
        %v1240 = vunpack.c.h.b16 %v1068
        %v1241 = vunpack.c.l.b16 %v1069
        %v1242 = vunpack.c.h.b16 %v1069
        %v1243 = vunpack.c.l.b16 %v1070
        %v1244 = vunpack.c.h.b16 %v1070
        %v1245 = vunpack.c.l.b16 %v1071
        %v1246 = vunpack.c.h.b16 %v1071
        %v1247 = vunpack.c.l.b16 %v1072
        %v1248 = vunpack.c.h.b16 %v1072
        %v1249 = vunpack.c.l.b16 %v1073
        %v1250 = vunpack.c.h.b16 %v1073
        %v1251 = vunpack.c.l.b16 %v1074
        %v1252 = vunpack.c.h.b16 %v1074
        %v1253 = vunpack.c.l.b16 %v1075
        %v1254 = vunpack.c.h.b16 %v1075
        %v1255 = vunpack.c.l.b16 %v1076
        %v1256 = vunpack.c.h.b16 %v1076
        %v1257 = vunpack.c.l.b16 %v1077
        %v1258 = vunpack.c.h.b16 %v1077
        %v1259 = vunpack.c.l.b16 %v1078
        %v1260 = vunpack.c.h.b16 %v1078
        %v1261 = vunpack.c.l.b16 %v1079
        %v1262 = vunpack.c.h.b16 %v1079
        %v1263 = vunpack.c.l.b16 %v1080
        %v1264 = vunpack.c.h.b16 %v1080
        %v1265 = vunpack.c.l.b16 %v1081
        %v1266 = vunpack.c.h.b16 %v1081
        %v1267 = vunpack.c.l.b16 %v1082
        %v1268 = vunpack.c.h.b16 %v1082
        %v1269 = vunpack.c.l.b16 %v1083
        %v1270 = vunpack.c.h.b16 %v1083
        %v1271 = vunpack.c.l.b16 %v1084
        %v1272 = vunpack.c.h.b16 %v1084
        %v1273 = vunpack.c.l.b16 %v1085
        %v1274 = vunpack.c.h.b16 %v1085
        %v1275 = vunpack.c.l.b16 %v1086
        %v1276 = vunpack.c.h.b16 %v1086
        %v1277 = vunpack.c.l.b16 %v1087
        %v1278 = vunpack.c.h.b16 %v1087
        %v1279 = vunpack.c.l.b16 %v1088
        %v1280 = vunpack.c.h.b16 %v1088
        %v1281 = vunpack.c.l.b16 %v1089
        %v1282 = vunpack.c.h.b16 %v1089
        %v1283 = vunpack.c.l.b16 %v1090
        %v1284 = vunpack.c.h.b16 %v1090
        %v1285 = vunpack.c.l.b16 %v1091
        %v1286 = vunpack.c.h.b16 %v1091
        %v1287 = vunpack.c.l.b16 %v1092
        %v1288 = vunpack.c.h.b16 %v1092
        %v1289 = vunpack.c.l.b16 %v1093
        %v1290 = vunpack.c.h.b16 %v1093
        %v1291 = vunpack.c.l.b16 %v1094
        %v1292 = vunpack.c.h.b16 %v1094
        %v1293 = vunpack.c.l.b16 %v1095
        %v1294 = vunpack.c.h.b16 %v1095
        %v1295 = vunpack.c.l.b16 %v1096
        %v1296 = vunpack.c.h.b16 %v1096
        %v1297 = vunpack.c.l.b16 %v1097
        %v1298 = vunpack.c.h.b16 %v1097
        %v1299 = vunpack.c.l.b16 %v1098
        %v1300 = vunpack.c.h.b16 %v1098
        %v1301 = vunpack.c.l.b16 %v1099
        %v1302 = vunpack.c.h.b16 %v1099
        %v1303 = vunpack.c.l.b16 %v1100
        %v1304 = vunpack.c.h.b16 %v1100
        %v1305 = vunpack.c.l.b16 %v1101
        %v1306 = vunpack.c.h.b16 %v1101
        %v1307 = vunpack.c.l.b16 %v1102
        %v1308 = vunpack.c.h.b16 %v1102
        %v1309 = vunpack.c.l.b16 %v1103
        %v1310 = vunpack.c.h.b16 %v1103
        %v1311 = vunpack.c.l.b16 %v1104
        %v1312 = vunpack.c.h.b16 %v1104
        %v1313 = vunpack.c.l.b16 %v1105
        %v1314 = vunpack.c.h.b16 %v1105
        %v1315 = vunpack.c.l.b16 %v1106
        %v1316 = vunpack.c.h.b16 %v1106
        %v1317 = vunpack.c.l.b16 %v1107
        %v1318 = vunpack.c.h.b16 %v1107
        %v1319 = vunpack.c.l.b16 %v1108
        %v1320 = vunpack.c.h.b16 %v1108
        %v1321 = vunpack.c.l.b16 %v1109
        %v1322 = vunpack.c.h.b16 %v1109
        %v1323 = vunpack.c.l.b16 %v1110
        %v1324 = vunpack.c.h.b16 %v1110
        %v1325 = vunpack.c.l.b16 %v1111
        %v1326 = vunpack.c.h.b16 %v1111
        %v1327 = vunpack.c.l.b16 %v1112
        %v1328 = vunpack.c.h.b16 %v1112
        %v1329 = vunpack.c.l.b16 %v1113
        %v1330 = vunpack.c.h.b16 %v1113
        %v1331 = vunpack.c.l.b16 %v1114
        %v1332 = vunpack.c.h.b16 %v1114
        %v1333 = vunpack.c.l.b16 %v1115
        %v1334 = vunpack.c.h.b16 %v1115
        %v1335 = vunpack.c.l.b16 %v1116
        %v1336 = vunpack.c.h.b16 %v1116
        %v1337 = vunpack.c.l.b16 %v1117
        %v1338 = vunpack.c.h.b16 %v1117
        %v1339 = vunpack.c.l.b16 %v1118
        %v1340 = vunpack.c.h.b16 %v1118
        %v1341 = vunpack.c.l.b16 %v1119
        %v1342 = vunpack.c.h.b16 %v1119
        %v1343 = vunpack.c.l.b16 %v1120
        %v1344 = vunpack.c.h.b16 %v1120
        %v1345 = vunpack.c.l.b16 %v1121
        %v1346 = vunpack.c.h.b16 %v1121
        %v1347 = vunpack.c.l.b16 %v1122
        %v1348 = vunpack.c.h.b16 %v1122
        %v1349 = vunpack.c.l.b16 %v1123
        %v1350 = vunpack.c.h.b16 %v1123
        %v1351 = vunpack.c.l.b16 %v1124
        %v1352 = vunpack.c.h.b16 %v1124
        %v1353 = vunpack.c.l.b16 %v1125
        %v1354 = vunpack.c.h.b16 %v1125
        %v1355 = vunpack.c.l.b16 %v1126
        %v1356 = vunpack.c.h.b16 %v1126
        %v1357 = vunpack.c.l.b16 %v1127
        %v1358 = vunpack.c.h.b16 %v1127
        %v1359 = vunpack.c.l.b16 %v1128
        %v1360 = vunpack.c.h.b16 %v1128
        %v1361 = vunpack.c.l.b16 %v1129
        %v1362 = vunpack.c.h.b16 %v1129
        %v1363 = vunpack.c.l.b16 %v1130
        %v1364 = vunpack.c.h.b16 %v1130
        %v1365 = vunpack.c.l.b16 %v1131
        %v1366 = vunpack.c.h.b16 %v1131
        %v1367 = vpack.c.b16 %v1243, %v1239
        %v1368 = vpack.c.b16 %v1244, %v1240
        %v1369 = vpack.c.b16 %v1245, %v1241
        %v1370 = vpack.c.b16 %v1246, %v1242
        %v1371 = vpack.c.b16 %v1251, %v1247
        %v1372 = vpack.c.b16 %v1252, %v1248
        %v1373 = vpack.c.b16 %v1253, %v1249
        %v1374 = vpack.c.b16 %v1254, %v1250
        %v1375 = vpack.c.b16 %v1259, %v1255
        %v1376 = vpack.c.b16 %v1260, %v1256
        %v1377 = vpack.c.b16 %v1261, %v1257
        %v1378 = vpack.c.b16 %v1262, %v1258
        %v1379 = vpack.c.b16 %v1267, %v1263
        %v1380 = vpack.c.b16 %v1268, %v1264
        %v1381 = vpack.c.b16 %v1269, %v1265
        %v1382 = vpack.c.b16 %v1270, %v1266
        %v1383 = vpack.c.b16 %v1275, %v1271
        %v1384 = vpack.c.b16 %v1276, %v1272
        %v1385 = vpack.c.b16 %v1277, %v1273
        %v1386 = vpack.c.b16 %v1278, %v1274
        %v1387 = vpack.c.b16 %v1283, %v1279
        %v1388 = vpack.c.b16 %v1284, %v1280
        %v1389 = vpack.c.b16 %v1285, %v1281
        %v1390 = vpack.c.b16 %v1286, %v1282
        %v1391 = vpack.c.b16 %v1291, %v1287
        %v1392 = vpack.c.b16 %v1292, %v1288
        %v1393 = vpack.c.b16 %v1293, %v1289
        %v1394 = vpack.c.b16 %v1294, %v1290
        %v1395 = vpack.c.b16 %v1299, %v1295
        %v1396 = vpack.c.b16 %v1300, %v1296
        %v1397 = vpack.c.b16 %v1301, %v1297
        %v1398 = vpack.c.b16 %v1302, %v1298
        %v1399 = vpack.c.b16 %v1307, %v1303
        %v1400 = vpack.c.b16 %v1308, %v1304
        %v1401 = vpack.c.b16 %v1309, %v1305
        %v1402 = vpack.c.b16 %v1310, %v1306
        %v1403 = vpack.c.b16 %v1315, %v1311
        %v1404 = vpack.c.b16 %v1316, %v1312
        %v1405 = vpack.c.b16 %v1317, %v1313
        %v1406 = vpack.c.b16 %v1318, %v1314
        %v1407 = vpack.c.b16 %v1323, %v1319
        %v1408 = vpack.c.b16 %v1324, %v1320
        %v1409 = vpack.c.b16 %v1325, %v1321
        %v1410 = vpack.c.b16 %v1326, %v1322
        %v1411 = vpack.c.b16 %v1331, %v1327
        %v1412 = vpack.c.b16 %v1332, %v1328
        %v1413 = vpack.c.b16 %v1333, %v1329
        %v1414 = vpack.c.b16 %v1334, %v1330
        %v1415 = vpack.c.b16 %v1339, %v1335
        %v1416 = vpack.c.b16 %v1340, %v1336
        %v1417 = vpack.c.b16 %v1341, %v1337
        %v1418 = vpack.c.b16 %v1342, %v1338
        %v1419 = vpack.c.b16 %v1347, %v1343
        %v1420 = vpack.c.b16 %v1348, %v1344
        %v1421 = vpack.c.b16 %v1349, %v1345
        %v1422 = vpack.c.b16 %v1350, %v1346
        %v1423 = vpack.c.b16 %v1355, %v1351
        %v1424 = vpack.c.b16 %v1356, %v1352
        %v1425 = vpack.c.b16 %v1357, %v1353
        %v1426 = vpack.c.b16 %v1358, %v1354
        %v1427 = vpack.c.b16 %v1363, %v1359
        %v1428 = vpack.c.b16 %v1364, %v1360
        %v1429 = vpack.c.b16 %v1365, %v1361
        %v1430 = vpack.c.b16 %v1366, %v1362
        %1495 = vmatprep.subr.bf16.mxu0 0
        %1496 = vmatpush1.bf16.msra.mxu0 %v1135
        %1497 = vmatprep.subr.bf16.mxu0 0
        %1498 = vmatpush1.bf16.msra.mxu0 %v1136
        %1499 = vmatprep.subr.bf16.mxu0 0
        %1500 = vmatpush1.bf16.msra.mxu0 %v1137
        %1501 = vmatprep.subr.bf16.mxu0 0
        %1502 = vmatpush1.bf16.msra.mxu0 %v1138
        %1503 = vmatprep.subr.bf16.mxu0 0
        %1504 = vmatpush1.bf16.msra.mxu0 %v1139
        %1505 = vmatprep.subr.bf16.mxu0 0
        %1506 = vmatpush1.bf16.msra.mxu0 %v1140
        %1507 = vmatprep.subr.bf16.mxu0 0
        %1508 = vmatpush1.bf16.msra.mxu0 %v1141
        %1509 = vmatprep.subr.bf16.mxu0 0
        %1510 = vmatpush1.bf16.msra.mxu0 %v1142
        %1511 = vmatprep.subr.bf16.mxu0 0
        %1512 = vmatpush1.bf16.msra.mxu0 %v1143
        %1513 = vmatprep.subr.bf16.mxu0 0
        %1514 = vmatpush1.bf16.msra.mxu0 %v1144
        %1515 = vmatprep.subr.bf16.mxu0 0
        %1516 = vmatpush1.bf16.msra.mxu0 %v1145
        %1517 = vmatprep.subr.bf16.mxu0 0
        %1518 = vmatpush1.bf16.msra.mxu0 %v1146
        %1519 = vmatprep.subr.bf16.mxu0 0
        %1520 = vmatpush1.bf16.msra.mxu0 %v1147
        %1521 = vmatprep.subr.bf16.mxu0 0
        %1522 = vmatpush1.bf16.msra.mxu0 %v1148
        %1523 = vmatprep.subr.bf16.mxu0 0
        %1524 = vmatpush1.bf16.msra.mxu0 %v1149
        %1525 = vmatprep.subr.bf16.mxu0 0
        %1526 = vmatpush1.bf16.msra.mxu0 %v1150
        %1527 = vmatprep.mubr.bf16.mxu0 %v1368
        %1528 = vmatmul.mubr.bf16.gmra.mrb[0].mxu0 %v1367
        %v1529 = vpop.f32.mrb[0].mxu0
        %v1530 = vadd.f32 %v1173, %v1529
        %v1531 = vpop.f32.mrb[0].mxu0
        %v1532 = vpop.f32.mrb[0].mxu0
        %v1533 = vadd.f32 %v1173, %v1532
        %v1534 = vpop.f32.mrb[0].mxu0
        %1535 = vmatprep.mubr.bf16.mxu0 %v1372
        %1536 = vmatmul.mubr.bf16.gmra.mrb[0].mxu0 %v1371
        %v1537 = vpop.f32.mrb[0].mxu0
        %v1538 = vadd.f32 %v1173, %v1537
        %v1539 = vpop.f32.mrb[0].mxu0
        %v1540 = vpop.f32.mrb[0].mxu0
        %v1541 = vadd.f32 %v1173, %v1540
        %v1542 = vpop.f32.mrb[0].mxu0
        %1543 = vmatprep.mubr.bf16.mxu0 %v1376
        %1544 = vmatmul.mubr.bf16.gmra.mrb[0].mxu0 %v1375
        %v1545 = vpop.f32.mrb[0].mxu0
        %v1546 = vadd.f32 %v1173, %v1545
        %v1547 = vpop.f32.mrb[0].mxu0
        %v1548 = vpop.f32.mrb[0].mxu0
        %v1549 = vadd.f32 %v1173, %v1548
        %v1550 = vpop.f32.mrb[0].mxu0
        %1551 = vmatprep.mubr.bf16.mxu0 %v1380
        %1552 = vmatmul.mubr.bf16.gmra.mrb[0].mxu0 %v1379
        %v1553 = vpop.f32.mrb[0].mxu0
        %v1554 = vadd.f32 %v1173, %v1553
        %v1555 = vpop.f32.mrb[0].mxu0
        %v1556 = vpop.f32.mrb[0].mxu0
        %v1557 = vadd.f32 %v1173, %v1556
        %v1558 = vpop.f32.mrb[0].mxu0
        %1559 = vmatprep.mubr.bf16.mxu0 %v1384
        %1560 = vmatmul.mubr.bf16.gmra.mrb[0].mxu0 %v1383
        %v1561 = vpop.f32.mrb[0].mxu0
        %v1562 = vadd.f32 %v1173, %v1561
        %v1563 = vpop.f32.mrb[0].mxu0
        %v1564 = vpop.f32.mrb[0].mxu0
        %v1565 = vadd.f32 %v1173, %v1564
        %v1566 = vpop.f32.mrb[0].mxu0
        %1567 = vmatprep.mubr.bf16.mxu0 %v1388
        %1568 = vmatmul.mubr.bf16.gmra.mrb[0].mxu0 %v1387
        %v1569 = vpop.f32.mrb[0].mxu0
        %v1570 = vadd.f32 %v1173, %v1569
        %v1571 = vpop.f32.mrb[0].mxu0
        %v1572 = vpop.f32.mrb[0].mxu0
        %v1573 = vadd.f32 %v1173, %v1572
        %v1574 = vpop.f32.mrb[0].mxu0
        %1575 = vmatprep.mubr.bf16.mxu0 %v1392
        %1576 = vmatmul.mubr.bf16.gmra.mrb[0].mxu0 %v1391
        %v1577 = vpop.f32.mrb[0].mxu0
        %v1578 = vadd.f32 %v1173, %v1577
        %v1579 = vpop.f32.mrb[0].mxu0
        %v1580 = vpop.f32.mrb[0].mxu0
        %v1581 = vadd.f32 %v1173, %v1580
        %v1582 = vpop.f32.mrb[0].mxu0
        %1583 = vmatprep.mubr.bf16.mxu0 %v1396
        %1584 = vmatmul.mubr.bf16.gmra.mrb[0].mxu0 %v1395
        %v1585 = vpop.f32.mrb[0].mxu0
        %v1586 = vadd.f32 %v1173, %v1585
        %v1587 = vpop.f32.mrb[0].mxu0
        %v1588 = vpop.f32.mrb[0].mxu0
        %v1589 = vadd.f32 %v1173, %v1588
        %v1590 = vpop.f32.mrb[0].mxu0
        %1591 = vmatprep.mubr.bf16.mxu0 %v1400
        %1592 = vmatmul.mubr.bf16.gmra.mrb[0].mxu0 %v1399
        %v1593 = vpop.f32.mrb[0].mxu0
        %v1594 = vadd.f32 %v1173, %v1593
        %v1595 = vpop.f32.mrb[0].mxu0
        %v1596 = vpop.f32.mrb[0].mxu0
        %v1597 = vadd.f32 %v1173, %v1596
        %v1598 = vpop.f32.mrb[0].mxu0
        %1599 = vmatprep.mubr.bf16.mxu0 %v1404
        %1600 = vmatmul.mubr.bf16.gmra.mrb[0].mxu0 %v1403
        %v1601 = vpop.f32.mrb[0].mxu0
        %v1602 = vadd.f32 %v1173, %v1601
        %v1603 = vpop.f32.mrb[0].mxu0
        %v1604 = vpop.f32.mrb[0].mxu0
        %v1605 = vadd.f32 %v1173, %v1604
        %v1606 = vpop.f32.mrb[0].mxu0
        %1607 = vmatprep.mubr.bf16.mxu0 %v1408
        %1608 = vmatmul.mubr.bf16.gmra.mrb[0].mxu0 %v1407
        %v1609 = vpop.f32.mrb[0].mxu0
        %v1610 = vadd.f32 %v1173, %v1609
        %v1611 = vpop.f32.mrb[0].mxu0
        %v1612 = vpop.f32.mrb[0].mxu0
        %v1613 = vadd.f32 %v1173, %v1612
        %v1614 = vpop.f32.mrb[0].mxu0
        %1615 = vmatprep.mubr.bf16.mxu0 %v1412
        %1616 = vmatmul.mubr.bf16.gmra.mrb[0].mxu0 %v1411
        %v1617 = vpop.f32.mrb[0].mxu0
        %v1618 = vadd.f32 %v1173, %v1617
        %v1619 = vpop.f32.mrb[0].mxu0
        %v1620 = vpop.f32.mrb[0].mxu0
        %v1621 = vadd.f32 %v1173, %v1620
        %v1622 = vpop.f32.mrb[0].mxu0
        %1623 = vmatprep.mubr.bf16.mxu0 %v1416
        %1624 = vmatmul.mubr.bf16.gmra.mrb[0].mxu0 %v1415
        %v1625 = vpop.f32.mrb[0].mxu0
        %v1626 = vadd.f32 %v1173, %v1625
        %v1627 = vpop.f32.mrb[0].mxu0
        %v1628 = vpop.f32.mrb[0].mxu0
        %v1629 = vadd.f32 %v1173, %v1628
        %v1630 = vpop.f32.mrb[0].mxu0
        %1631 = vmatprep.mubr.bf16.mxu0 %v1420
        %1632 = vmatmul.mubr.bf16.gmra.mrb[0].mxu0 %v1419
        %v1633 = vpop.f32.mrb[0].mxu0
        %v1634 = vadd.f32 %v1173, %v1633
        %v1635 = vpop.f32.mrb[0].mxu0
        %v1636 = vpop.f32.mrb[0].mxu0
        %v1637 = vadd.f32 %v1173, %v1636
        %v1638 = vpop.f32.mrb[0].mxu0
        %1639 = vmatprep.mubr.bf16.mxu0 %v1424
        %1640 = vmatmul.mubr.bf16.gmra.mrb[0].mxu0 %v1423
        %v1641 = vpop.f32.mrb[0].mxu0
        %v1642 = vadd.f32 %v1173, %v1641
        %v1643 = vpop.f32.mrb[0].mxu0
        %v1644 = vpop.f32.mrb[0].mxu0
        %v1645 = vadd.f32 %v1173, %v1644
        %v1646 = vpop.f32.mrb[0].mxu0
        %1647 = vmatprep.mubr.bf16.mxu0 %v1428
        %1648 = vmatmul.mubr.bf16.gmra.mrb[0].mxu0 %v1427
        %v1649 = vpop.f32.mrb[0].mxu0
        %v1650 = vadd.f32 %v1173, %v1649
        %v1651 = vpop.f32.mrb[0].mxu0
        %v1652 = vpop.f32.mrb[0].mxu0
        %v1653 = vadd.f32 %v1173, %v1652
        %v1654 = vpop.f32.mrb[0].mxu0
        %1655 = vdwg.mxu0
        %1656 = vmatprep.subr.bf16.mxu0 0
        %1657 = vmatpush1.bf16.msra.mxu0 %v1151
        %1658 = vmatprep.subr.bf16.mxu0 0
        %1659 = vmatpush1.bf16.msra.mxu0 %v1152
        %1660 = vmatprep.subr.bf16.mxu0 0
        %1661 = vmatpush1.bf16.msra.mxu0 %v1153
        %1662 = vmatprep.subr.bf16.mxu0 0
        %1663 = vmatpush1.bf16.msra.mxu0 %v1154
        %1664 = vmatprep.subr.bf16.mxu0 0
        %1665 = vmatpush1.bf16.msra.mxu0 %v1155
        %1666 = vmatprep.subr.bf16.mxu0 0
        %1667 = vmatpush1.bf16.msra.mxu0 %v1156
        %1668 = vmatprep.subr.bf16.mxu0 0
        %1669 = vmatpush1.bf16.msra.mxu0 %v1157
        %1670 = vmatprep.subr.bf16.mxu0 0
        %1671 = vmatpush1.bf16.msra.mxu0 %v1158
        %1672 = vmatprep.subr.bf16.mxu0 0
        %1673 = vmatpush1.bf16.msra.mxu0 %v1159
        %1674 = vmatprep.subr.bf16.mxu0 0
        %1675 = vmatpush1.bf16.msra.mxu0 %v1160
        %1676 = vmatprep.subr.bf16.mxu0 0
        %1677 = vmatpush1.bf16.msra.mxu0 %v1161
        %1678 = vmatprep.subr.bf16.mxu0 0
        %1679 = vmatpush1.bf16.msra.mxu0 %v1162
        %1680 = vmatprep.subr.bf16.mxu0 0
        %1681 = vmatpush1.bf16.msra.mxu0 %v1163
        %1682 = vmatprep.subr.bf16.mxu0 0
        %1683 = vmatpush1.bf16.msra.mxu0 %v1164
        %1684 = vmatprep.subr.bf16.mxu0 0
        %1685 = vmatpush1.bf16.msra.mxu0 %v1165
        %1686 = vmatprep.subr.bf16.mxu0 0
        %1687 = vmatpush1.bf16.msra.mxu0 %v1166
        %1688 = vmatprep.mubr.bf16.mxu0 %v1370
        %1689 = vmatmul.mubr.bf16.gmra.mrb[0].mxu0 %v1369
        %v1690 = vpop.f32.mrb[0].mxu0
        %v1691 = vadd.f32 %v1530, %v1690
        %v1692 = vpop.f32.mrb[0].mxu0
        %v1693 = vpop.f32.mrb[0].mxu0
        %v1694 = vadd.f32 %v1533, %v1693
        %v1695 = vpop.f32.mrb[0].mxu0
        %1696 = vmatprep.mubr.bf16.mxu0 %v1374
        %1697 = vmatmul.mubr.bf16.gmra.mrb[0].mxu0 %v1373
        %v1698 = vpop.f32.mrb[0].mxu0
        %v1699 = vadd.f32 %v1538, %v1698
        %v1700 = vpop.f32.mrb[0].mxu0
        %v1701 = vpop.f32.mrb[0].mxu0
        %v1702 = vadd.f32 %v1541, %v1701
        %v1703 = vpop.f32.mrb[0].mxu0
        %1704 = vmatprep.mubr.bf16.mxu0 %v1378
        %1705 = vmatmul.mubr.bf16.gmra.mrb[0].mxu0 %v1377
        %v1706 = vpop.f32.mrb[0].mxu0
        %v1707 = vadd.f32 %v1546, %v1706
        %v1708 = vpop.f32.mrb[0].mxu0
        %v1709 = vpop.f32.mrb[0].mxu0
        %v1710 = vadd.f32 %v1549, %v1709
        %v1711 = vpop.f32.mrb[0].mxu0
        %1712 = vmatprep.mubr.bf16.mxu0 %v1382
        %1713 = vmatmul.mubr.bf16.gmra.mrb[0].mxu0 %v1381
        %v1714 = vpop.f32.mrb[0].mxu0
        %v1715 = vadd.f32 %v1554, %v1714
        %v1716 = vpop.f32.mrb[0].mxu0
        %v1717 = vpop.f32.mrb[0].mxu0
        %v1718 = vadd.f32 %v1557, %v1717
        %v1719 = vpop.f32.mrb[0].mxu0
        %1720 = vmatprep.mubr.bf16.mxu0 %v1386
        %1721 = vmatmul.mubr.bf16.gmra.mrb[0].mxu0 %v1385
        %v1722 = vpop.f32.mrb[0].mxu0
        %v1723 = vadd.f32 %v1562, %v1722
        %v1724 = vpop.f32.mrb[0].mxu0
        %v1725 = vpop.f32.mrb[0].mxu0
        %v1726 = vadd.f32 %v1565, %v1725
        %v1727 = vpop.f32.mrb[0].mxu0
        %1728 = vmatprep.mubr.bf16.mxu0 %v1390
        %1729 = vmatmul.mubr.bf16.gmra.mrb[0].mxu0 %v1389
        %v1730 = vpop.f32.mrb[0].mxu0
        %v1731 = vadd.f32 %v1570, %v1730
        %v1732 = vpop.f32.mrb[0].mxu0
        %v1733 = vpop.f32.mrb[0].mxu0
        %v1734 = vadd.f32 %v1573, %v1733
        %v1735 = vpop.f32.mrb[0].mxu0
        %1736 = vmatprep.mubr.bf16.mxu0 %v1394
        %1737 = vmatmul.mubr.bf16.gmra.mrb[0].mxu0 %v1393
        %v1738 = vpop.f32.mrb[0].mxu0
        %v1739 = vadd.f32 %v1578, %v1738
        %v1740 = vpop.f32.mrb[0].mxu0
        %v1741 = vpop.f32.mrb[0].mxu0
        %v1742 = vadd.f32 %v1581, %v1741
        %v1743 = vpop.f32.mrb[0].mxu0
        %1744 = vmatprep.mubr.bf16.mxu0 %v1398
        %1745 = vmatmul.mubr.bf16.gmra.mrb[0].mxu0 %v1397
        %v1746 = vpop.f32.mrb[0].mxu0
        %v1747 = vadd.f32 %v1586, %v1746
        %v1748 = vpop.f32.mrb[0].mxu0
        %v1749 = vpop.f32.mrb[0].mxu0
        %v1750 = vadd.f32 %v1589, %v1749
        %v1751 = vpop.f32.mrb[0].mxu0
        %1752 = vmatprep.mubr.bf16.mxu0 %v1402
        %1753 = vmatmul.mubr.bf16.gmra.mrb[0].mxu0 %v1401
        %v1754 = vpop.f32.mrb[0].mxu0
        %v1755 = vadd.f32 %v1594, %v1754
        %v1756 = vpop.f32.mrb[0].mxu0
        %v1757 = vpop.f32.mrb[0].mxu0
        %v1758 = vadd.f32 %v1597, %v1757
        %v1759 = vpop.f32.mrb[0].mxu0
        %1760 = vmatprep.mubr.bf16.mxu0 %v1406
        %1761 = vmatmul.mubr.bf16.gmra.mrb[0].mxu0 %v1405
        %v1762 = vpop.f32.mrb[0].mxu0
        %v1763 = vadd.f32 %v1602, %v1762
        %v1764 = vpop.f32.mrb[0].mxu0
        %v1765 = vpop.f32.mrb[0].mxu0
        %v1766 = vadd.f32 %v1605, %v1765
        %v1767 = vpop.f32.mrb[0].mxu0
        %1768 = vmatprep.mubr.bf16.mxu0 %v1410
        %1769 = vmatmul.mubr.bf16.gmra.mrb[0].mxu0 %v1409
        %v1770 = vpop.f32.mrb[0].mxu0
        %v1771 = vadd.f32 %v1610, %v1770
        %v1772 = vpop.f32.mrb[0].mxu0
        %v1773 = vpop.f32.mrb[0].mxu0
        %v1774 = vadd.f32 %v1613, %v1773
        %v1775 = vpop.f32.mrb[0].mxu0
        %1776 = vmatprep.mubr.bf16.mxu0 %v1414
        %1777 = vmatmul.mubr.bf16.gmra.mrb[0].mxu0 %v1413
        %v1778 = vpop.f32.mrb[0].mxu0
        %v1779 = vadd.f32 %v1618, %v1778
        %v1780 = vpop.f32.mrb[0].mxu0
        %v1781 = vpop.f32.mrb[0].mxu0
        %v1782 = vadd.f32 %v1621, %v1781
        %v1783 = vpop.f32.mrb[0].mxu0
        %1784 = vmatprep.mubr.bf16.mxu0 %v1418
        %1785 = vmatmul.mubr.bf16.gmra.mrb[0].mxu0 %v1417
        %v1786 = vpop.f32.mrb[0].mxu0
        %v1787 = vadd.f32 %v1626, %v1786
        %v1788 = vpop.f32.mrb[0].mxu0
        %v1789 = vpop.f32.mrb[0].mxu0
        %v1790 = vadd.f32 %v1629, %v1789
        %v1791 = vpop.f32.mrb[0].mxu0
        %1792 = vmatprep.mubr.bf16.mxu0 %v1422
        %1793 = vmatmul.mubr.bf16.gmra.mrb[0].mxu0 %v1421
        %v1794 = vpop.f32.mrb[0].mxu0
        %v1795 = vadd.f32 %v1634, %v1794
        %v1796 = vpop.f32.mrb[0].mxu0
        %v1797 = vpop.f32.mrb[0].mxu0
        %v1798 = vadd.f32 %v1637, %v1797
        %v1799 = vpop.f32.mrb[0].mxu0
        %1800 = vmatprep.mubr.bf16.mxu0 %v1426
        %1801 = vmatmul.mubr.bf16.gmra.mrb[0].mxu0 %v1425
        %v1802 = vpop.f32.mrb[0].mxu0
        %v1803 = vadd.f32 %v1642, %v1802
        %v1804 = vpop.f32.mrb[0].mxu0
        %v1805 = vpop.f32.mrb[0].mxu0
        %v1806 = vadd.f32 %v1645, %v1805
        %v1807 = vpop.f32.mrb[0].mxu0
        %1808 = vmatprep.mubr.bf16.mxu0 %v1430
        %1809 = vmatmul.mubr.bf16.gmra.mrb[0].mxu0 %v1429
        %v1810 = vpop.f32.mrb[0].mxu0
        %v1811 = vadd.f32 %v1650, %v1810
        %v1812 = vpop.f32.mrb[0].mxu0
        %v1813 = vpop.f32.mrb[0].mxu0
        %v1814 = vadd.f32 %v1653, %v1813
        %v1815 = vpop.f32.mrb[0].mxu0
        %1816 = vdwg.mxu0
        %p1817 = scmp.lt.s32.totalorder %s28, 4
        // Predicated region
        $region73: #{tpu_custom_call.1} parent=47 // pred_check
          %p1818 = pneg %p1817
        $region74: #{tpu_custom_call.1} parent=47 // pred_check_branch
          %1820 = sbr.rel (%p1818) target = $region76
        $region75: #{tpu_custom_call.1} parent=47 // pred_region
          %v1821 = vmax.f32 %v1691, 0.0
          %v1822 = vmax.f32 %v1694, 0.0
          %v1823 = vmax.f32 %v1699, 0.0
          %v1824 = vmax.f32 %v1702, 0.0
          %v1825 = vmax.f32 %v1707, 0.0
          %v1826 = vmax.f32 %v1710, 0.0
          %v1827 = vmax.f32 %v1715, 0.0
          %v1828 = vmax.f32 %v1718, 0.0
          %v1829 = vmax.f32 %v1723, 0.0
          %v1830 = vmax.f32 %v1726, 0.0
          %v1831 = vmax.f32 %v1731, 0.0
          %v1832 = vmax.f32 %v1734, 0.0
          %v1833 = vmax.f32 %v1739, 0.0
          %v1834 = vmax.f32 %v1742, 0.0
          %v1835 = vmax.f32 %v1747, 0.0
          %v1836 = vmax.f32 %v1750, 0.0
          %v1837 = vmax.f32 %v1755, 0.0
          %v1838 = vmax.f32 %v1758, 0.0
          %v1839 = vmax.f32 %v1763, 0.0
          %v1840 = vmax.f32 %v1766, 0.0
          %v1841 = vmax.f32 %v1771, 0.0
          %v1842 = vmax.f32 %v1774, 0.0
          %v1843 = vmax.f32 %v1779, 0.0
          %v1844 = vmax.f32 %v1782, 0.0
          %v1845 = vmax.f32 %v1787, 0.0
          %v1846 = vmax.f32 %v1790, 0.0
          %v1847 = vmax.f32 %v1795, 0.0
          %v1848 = vmax.f32 %v1798, 0.0
          %v1849 = vmax.f32 %v1803, 0.0
          %v1850 = vmax.f32 %v1806, 0.0
          %v1851 = vmax.f32 %v1811, 0.0
          %v1852 = vmax.f32 %v1814, 0.0
          %v1853 = vpack.c.bf16 %v1822, %v1821
          %v1854 = vpack.c.bf16 %v1824, %v1823
          %v1855 = vpack.c.bf16 %v1826, %v1825
          %v1856 = vpack.c.bf16 %v1828, %v1827
          %v1857 = vpack.c.bf16 %v1830, %v1829
          %v1858 = vpack.c.bf16 %v1832, %v1831
          %v1859 = vpack.c.bf16 %v1834, %v1833
          %v1860 = vpack.c.bf16 %v1836, %v1835
          %v1861 = vpack.c.bf16 %v1838, %v1837
          %v1862 = vpack.c.bf16 %v1840, %v1839
          %v1863 = vpack.c.bf16 %v1842, %v1841
          %v1864 = vpack.c.bf16 %v1844, %v1843
          %v1865 = vpack.c.bf16 %v1846, %v1845
          %v1866 = vpack.c.bf16 %v1848, %v1847
          %v1867 = vpack.c.bf16 %v1850, %v1849
          %v1868 = vpack.c.bf16 %v1852, %v1851
          %s1869 = smul.u32 %s1037, 16
          %s1870 = smul.addr %s1869, 4
          %s1871 = scalar_lea.vmem [#allocation9], %s1870
          %v1872 = vld [vmem:[%s1871] sm:$0xf]
          %v1873 = vld [vmem:[%s1871 + $0x4] sm:$0xf]
          %v1874 = vld [vmem:[%s1871 + $0x8] sm:$0xf]
          %v1875 = vld [vmem:[%s1871 + $0xc] sm:$0xf]
          %v1876 = vld [vmem:[%s1871 + $0x10] sm:$0xf]
          %v1877 = vld [vmem:[%s1871 + $0x14] sm:$0xf]
          %v1878 = vld [vmem:[%s1871 + $0x18] sm:$0xf]
          %v1879 = vld [vmem:[%s1871 + $0x1c] sm:$0xf]
          %v1880 = vld [vmem:[%s1871 + $0x20] sm:$0xf]
          %v1881 = vld [vmem:[%s1871 + $0x24] sm:$0xf]
          %v1882 = vld [vmem:[%s1871 + $0x28] sm:$0xf]
          %v1883 = vld [vmem:[%s1871 + $0x2c] sm:$0xf]
          %v1884 = vld [vmem:[%s1871 + $0x30] sm:$0xf]
          %v1885 = vld [vmem:[%s1871 + $0x34] sm:$0xf]
          %v1886 = vld [vmem:[%s1871 + $0x38] sm:$0xf]
          %v1887 = vld [vmem:[%s1871 + $0x3c] sm:$0xf]
          %v1904 = vunpack.c.l.b16 %v1872
          %v1905 = vunpack.c.l.b16 %v1873
          %v1906 = vunpack.c.l.b16 %v1874
          %v1907 = vunpack.c.l.b16 %v1875
          %v1908 = vunpack.c.l.b16 %v1876
          %v1909 = vunpack.c.l.b16 %v1877
          %v1910 = vunpack.c.l.b16 %v1878
          %v1911 = vunpack.c.l.b16 %v1879
          %v1912 = vunpack.c.l.b16 %v1880
          %v1913 = vunpack.c.l.b16 %v1881
          %v1914 = vunpack.c.l.b16 %v1882
          %v1915 = vunpack.c.l.b16 %v1883
          %v1916 = vunpack.c.l.b16 %v1884
          %v1917 = vunpack.c.l.b16 %v1885
          %v1918 = vunpack.c.l.b16 %v1886
          %v1919 = vunpack.c.l.b16 %v1887
          %v1920 = vpack.c.b16 %v1905, %v1904
          %v1921 = vpack.c.b16 %v1907, %v1906
          %v1922 = vpack.c.b16 %v1909, %v1908
          %v1923 = vpack.c.b16 %v1911, %v1910
          %v1924 = vpack.c.b16 %v1913, %v1912
          %v1925 = vpack.c.b16 %v1915, %v1914
          %v1926 = vpack.c.b16 %v1917, %v1916
          %v1927 = vpack.c.b16 %v1919, %v1918
          %1936 = vmatprep.subr.bf16.mxu0 0
          %1937 = vmatpush1.bf16.msra.mxu0 %v1920
          %1938 = vmatprep.subr.bf16.mxu0 0
          %1939 = vmatpush1.bf16.msra.mxu0 %v1921
          %1940 = vmatprep.subr.bf16.mxu0 0
          %1941 = vmatpush1.bf16.msra.mxu0 %v1922
          %1942 = vmatprep.subr.bf16.mxu0 0
          %1943 = vmatpush1.bf16.msra.mxu0 %v1923
          %1944 = vmatprep.subr.bf16.mxu0 0
          %1945 = vmatpush1.bf16.msra.mxu0 %v1924
          %1946 = vmatprep.subr.bf16.mxu0 0
          %1947 = vmatpush1.bf16.msra.mxu0 %v1925
          %1948 = vmatprep.subr.bf16.mxu0 0
          %1949 = vmatpush1.bf16.msra.mxu0 %v1926
          %1950 = vmatprep.subr.bf16.mxu0 0
          %1951 = vmatpush1.bf16.msra.mxu0 %v1927
          %1952 = vmatprep.subr.bf16.mxu0 0
          %1953 = vmatpush1.bf16.msra.mxu0 0
          %1954 = vmatprep.subr.bf16.mxu0 0
          %1955 = vmatpush1.bf16.msra.mxu0 0
          %1956 = vmatprep.subr.bf16.mxu0 0
          %1957 = vmatpush1.bf16.msra.mxu0 0
          %1958 = vmatprep.subr.bf16.mxu0 0
          %1959 = vmatpush1.bf16.msra.mxu0 0
          %1960 = vmatprep.subr.bf16.mxu0 0
          %1961 = vmatpush1.bf16.msra.mxu0 0
          %1962 = vmatprep.subr.bf16.mxu0 0
          %1963 = vmatpush1.bf16.msra.mxu0 0
          %1964 = vmatprep.subr.bf16.mxu0 0
          %1965 = vmatpush1.bf16.msra.mxu0 0
          %1966 = vmatprep.subr.bf16.mxu0 0
          %1967 = vmatpush1.bf16.msra.mxu0 0
          %1968 = vmatprep.mubr.bf16.mxu0 0
          %1969 = vmatmul.mubr.bf16.gmra.mrb[0].mxu0 %v1853
          %v1970 = vpop.f32.mrb[0].mxu0
          %v1971 = vadd.f32 0.0, %v1970
          %v1972 = vpop.f32.mrb[0].mxu0
          %v1973 = vpop.f32.mrb[0].mxu0
          %v1974 = vadd.f32 0.0, %v1973
          %v1975 = vpop.f32.mrb[0].mxu0
          %1976 = vmatprep.mubr.bf16.mxu0 0
          %1977 = vmatmul.mubr.bf16.gmra.mrb[0].mxu0 %v1854
          %v1978 = vpop.f32.mrb[0].mxu0
          %v1979 = vadd.f32 0.0, %v1978
          %v1980 = vpop.f32.mrb[0].mxu0
          %v1981 = vpop.f32.mrb[0].mxu0
          %v1982 = vadd.f32 0.0, %v1981
          %v1983 = vpop.f32.mrb[0].mxu0
          %1984 = vmatprep.mubr.bf16.mxu0 0
          %1985 = vmatmul.mubr.bf16.gmra.mrb[0].mxu0 %v1855
          %v1986 = vpop.f32.mrb[0].mxu0
          %v1987 = vadd.f32 0.0, %v1986
          %v1988 = vpop.f32.mrb[0].mxu0
          %v1989 = vpop.f32.mrb[0].mxu0
          %v1990 = vadd.f32 0.0, %v1989
          %v1991 = vpop.f32.mrb[0].mxu0
          %1992 = vmatprep.mubr.bf16.mxu0 0
          %1993 = vmatmul.mubr.bf16.gmra.mrb[0].mxu0 %v1856
          %v1994 = vpop.f32.mrb[0].mxu0
          %v1995 = vadd.f32 0.0, %v1994
          %v1996 = vpop.f32.mrb[0].mxu0
          %v1997 = vpop.f32.mrb[0].mxu0
          %v1998 = vadd.f32 0.0, %v1997
          %v1999 = vpop.f32.mrb[0].mxu0
          %2000 = vmatprep.mubr.bf16.mxu0 0
          %2001 = vmatmul.mubr.bf16.gmra.mrb[0].mxu0 %v1857
          %v2002 = vpop.f32.mrb[0].mxu0
          %v2003 = vadd.f32 0.0, %v2002
          %v2004 = vpop.f32.mrb[0].mxu0
          %v2005 = vpop.f32.mrb[0].mxu0
          %v2006 = vadd.f32 0.0, %v2005
          %v2007 = vpop.f32.mrb[0].mxu0
          %2008 = vmatprep.mubr.bf16.mxu0 0
          %2009 = vmatmul.mubr.bf16.gmra.mrb[0].mxu0 %v1858
          %v2010 = vpop.f32.mrb[0].mxu0
          %v2011 = vadd.f32 0.0, %v2010
          %v2012 = vpop.f32.mrb[0].mxu0
          %v2013 = vpop.f32.mrb[0].mxu0
          %v2014 = vadd.f32 0.0, %v2013
          %v2015 = vpop.f32.mrb[0].mxu0
          %2016 = vmatprep.mubr.bf16.mxu0 0
          %2017 = vmatmul.mubr.bf16.gmra.mrb[0].mxu0 %v1859
          %v2018 = vpop.f32.mrb[0].mxu0
          %v2019 = vadd.f32 0.0, %v2018
          %v2020 = vpop.f32.mrb[0].mxu0
          %v2021 = vpop.f32.mrb[0].mxu0
          %v2022 = vadd.f32 0.0, %v2021
          %v2023 = vpop.f32.mrb[0].mxu0
          %2024 = vmatprep.mubr.bf16.mxu0 0
          %2025 = vmatmul.mubr.bf16.gmra.mrb[0].mxu0 %v1860
          %v2026 = vpop.f32.mrb[0].mxu0
          %v2027 = vadd.f32 0.0, %v2026
          %v2028 = vpop.f32.mrb[0].mxu0
          %v2029 = vpop.f32.mrb[0].mxu0
          %v2030 = vadd.f32 0.0, %v2029
          %v2031 = vpop.f32.mrb[0].mxu0
          %2032 = vmatprep.mubr.bf16.mxu0 0
          %2033 = vmatmul.mubr.bf16.gmra.mrb[0].mxu0 %v1861
          %v2034 = vpop.f32.mrb[0].mxu0
          %v2035 = vadd.f32 0.0, %v2034
          %v2036 = vpop.f32.mrb[0].mxu0
          %v2037 = vpop.f32.mrb[0].mxu0
          %v2038 = vadd.f32 0.0, %v2037
          %v2039 = vpop.f32.mrb[0].mxu0
          %2040 = vmatprep.mubr.bf16.mxu0 0
          %2041 = vmatmul.mubr.bf16.gmra.mrb[0].mxu0 %v1862
          %v2042 = vpop.f32.mrb[0].mxu0
          %v2043 = vadd.f32 0.0, %v2042
          %v2044 = vpop.f32.mrb[0].mxu0
          %v2045 = vpop.f32.mrb[0].mxu0
          %v2046 = vadd.f32 0.0, %v2045
          %v2047 = vpop.f32.mrb[0].mxu0
          %2048 = vmatprep.mubr.bf16.mxu0 0
          %2049 = vmatmul.mubr.bf16.gmra.mrb[0].mxu0 %v1863
          %v2050 = vpop.f32.mrb[0].mxu0
          %v2051 = vadd.f32 0.0, %v2050
          %v2052 = vpop.f32.mrb[0].mxu0
          %v2053 = vpop.f32.mrb[0].mxu0
          %v2054 = vadd.f32 0.0, %v2053
          %v2055 = vpop.f32.mrb[0].mxu0
          %2056 = vmatprep.mubr.bf16.mxu0 0
          %2057 = vmatmul.mubr.bf16.gmra.mrb[0].mxu0 %v1864
          %v2058 = vpop.f32.mrb[0].mxu0
          %v2059 = vadd.f32 0.0, %v2058
          %v2060 = vpop.f32.mrb[0].mxu0
          %v2061 = vpop.f32.mrb[0].mxu0
          %v2062 = vadd.f32 0.0, %v2061
          %v2063 = vpop.f32.mrb[0].mxu0
          %2064 = vmatprep.mubr.bf16.mxu0 0
          %2065 = vmatmul.mubr.bf16.gmra.mrb[0].mxu0 %v1865
          %v2066 = vpop.f32.mrb[0].mxu0
          %v2067 = vadd.f32 0.0, %v2066
          %v2068 = vpop.f32.mrb[0].mxu0
          %v2069 = vpop.f32.mrb[0].mxu0
          %v2070 = vadd.f32 0.0, %v2069
          %v2071 = vpop.f32.mrb[0].mxu0
          %2072 = vmatprep.mubr.bf16.mxu0 0
          %2073 = vmatmul.mubr.bf16.gmra.mrb[0].mxu0 %v1866
          %v2074 = vpop.f32.mrb[0].mxu0
          %v2075 = vadd.f32 0.0, %v2074
          %v2076 = vpop.f32.mrb[0].mxu0
          %v2077 = vpop.f32.mrb[0].mxu0
          %v2078 = vadd.f32 0.0, %v2077
          %v2079 = vpop.f32.mrb[0].mxu0
          %2080 = vmatprep.mubr.bf16.mxu0 0
          %2081 = vmatmul.mubr.bf16.gmra.mrb[0].mxu0 %v1867
          %v2082 = vpop.f32.mrb[0].mxu0
          %v2083 = vadd.f32 0.0, %v2082
          %v2084 = vpop.f32.mrb[0].mxu0
          %v2085 = vpop.f32.mrb[0].mxu0
          %v2086 = vadd.f32 0.0, %v2085
          %v2087 = vpop.f32.mrb[0].mxu0
          %2088 = vmatprep.mubr.bf16.mxu0 0
          %2089 = vmatmul.mubr.bf16.gmra.mrb[0].mxu0 %v1868
          %v2090 = vpop.f32.mrb[0].mxu0
          %v2091 = vadd.f32 0.0, %v2090
          %v2092 = vpop.f32.mrb[0].mxu0
          %v2093 = vpop.f32.mrb[0].mxu0
          %v2094 = vadd.f32 0.0, %v2093
          %v2095 = vpop.f32.mrb[0].mxu0
          %2096 = vdwg.mxu0
          %v2097 = vpack.c.bf16 %v1974, %v1971
          %v2098 = vpack.c.bf16 %v1982, %v1979
          %v2099 = vpack.c.bf16 %v1990, %v1987
          %v2100 = vpack.c.bf16 %v1998, %v1995
          %v2101 = vpack.c.bf16 %v2006, %v2003
          %v2102 = vpack.c.bf16 %v2014, %v2011
          %v2103 = vpack.c.bf16 %v2022, %v2019
          %v2104 = vpack.c.bf16 %v2030, %v2027
          %v2105 = vpack.c.bf16 %v2038, %v2035
          %v2106 = vpack.c.bf16 %v2046, %v2043
          %v2107 = vpack.c.bf16 %v2054, %v2051
          %v2108 = vpack.c.bf16 %v2062, %v2059
          %v2109 = vpack.c.bf16 %v2070, %v2067
          %v2110 = vpack.c.bf16 %v2078, %v2075
          %v2111 = vpack.c.bf16 %v2086, %v2083
          %v2112 = vpack.c.bf16 %v2094, %v2091
          %s2113 = sshra.s32 %s1062, 4
          %s2114 = sand.u32 %s1062, 15
          %s2115 = smul.u32 %s1061, 32
          %s2116 = sadd.s32 %s2113, %s2115
          %s2117 = smul.addr %s2116, 8
          %s2118 = scalar_lea.vmem [#allocation2], %s2117
          %2119 = vst [vmem:[%s2118] sm:$0xff] %v2097
          %2120 = vst [vmem:[%s2118 + $0x8] sm:$0xff] %v2098
          %2121 = vst [vmem:[%s2118 + $0x10] sm:$0xff] %v2099
          %2122 = vst [vmem:[%s2118 + $0x18] sm:$0xff] %v2100
          %2123 = vst [vmem:[%s2118 + $0x20] sm:$0xff] %v2101
          %2124 = vst [vmem:[%s2118 + $0x28] sm:$0xff] %v2102
          %2125 = vst [vmem:[%s2118 + $0x30] sm:$0xff] %v2103
          %2126 = vst [vmem:[%s2118 + $0x38] sm:$0xff] %v2104
          %2127 = vst [vmem:[%s2118 + $0x40] sm:$0xff] %v2105
          %2128 = vst [vmem:[%s2118 + $0x48] sm:$0xff] %v2106
          %2129 = vst [vmem:[%s2118 + $0x50] sm:$0xff] %v2107
          %2130 = vst [vmem:[%s2118 + $0x58] sm:$0xff] %v2108
          %2131 = vst [vmem:[%s2118 + $0x60] sm:$0xff] %v2109
          %2132 = vst [vmem:[%s2118 + $0x68] sm:$0xff] %v2110
          %2133 = vst [vmem:[%s2118 + $0x70] sm:$0xff] %v2111
          %2134 = vst [vmem:[%s2118 + $0x78] sm:$0xff] %v2112
        $region76: #{tpu_custom_call.1} parent=47 // pred_fallthru
          _
        %p2135 = scmp.eq.s32.totalorder %s28, 4
        // Predicated region
        $region77: #{tpu_custom_call.1} parent=47 // pred_check
          %p2136 = pneg %p2135
        $region78: #{tpu_custom_call.1} parent=47 // pred_check_branch
          %2138 = sbr.rel (%p2136) target = $region80
        $region79: #{tpu_custom_call.1} parent=47 // pred_region
          %v2139 = vld [vmem:[#allocation3] sm:$0xff]
          %v2140 = vld [vmem:[%s323] sm:$0xff]
          %v2141 = vpack.c.bf16 %v1694, %v1691
          %v2142 = vpack.c.bf16 %v1702, %v1699
          %v2143 = vpack.c.bf16 %v1710, %v1707
          %v2144 = vpack.c.bf16 %v1718, %v1715
          %v2145 = vpack.c.bf16 %v1726, %v1723
          %v2146 = vpack.c.bf16 %v1734, %v1731
          %v2147 = vpack.c.bf16 %v1742, %v1739
          %v2148 = vpack.c.bf16 %v1750, %v1747
          %v2149 = vpack.c.bf16 %v1758, %v1755
          %v2150 = vpack.c.bf16 %v1766, %v1763
          %v2151 = vpack.c.bf16 %v1774, %v1771
          %v2152 = vpack.c.bf16 %v1782, %v1779
          %v2153 = vpack.c.bf16 %v1790, %v1787
          %v2154 = vpack.c.bf16 %v1798, %v1795
          %v2155 = vpack.c.bf16 %v1806, %v1803
          %v2156 = vpack.c.bf16 %v1814, %v1811
          %v2158 = vunpack.c.l.b16 %v2140
          %v2159 = vunpack.c.h.b16 %v2140
          %v2160 = vpack.c.b16 %v2158, %v2158
          %v2161 = vpack.c.b16 %v2159, %v2159
          %2164 = vmatprep.subr.bf16.mxu0 0
          %2165 = vmatpush1.bf16.msra.mxu0 %v2141
          %2166 = vmatprep.subr.bf16.mxu0 0
          %2167 = vmatpush1.bf16.msra.mxu0 %v2142
          %2168 = vmatprep.subr.bf16.mxu0 0
          %2169 = vmatpush1.bf16.msra.mxu0 %v2143
          %2170 = vmatprep.subr.bf16.mxu0 0
          %2171 = vmatpush1.bf16.msra.mxu0 %v2144
          %2172 = vmatprep.subr.bf16.mxu0 0
          %2173 = vmatpush1.bf16.msra.mxu0 %v2145
          %2174 = vmatprep.subr.bf16.mxu0 0
          %2175 = vmatpush1.bf16.msra.mxu0 %v2146
          %2176 = vmatprep.subr.bf16.mxu0 0
          %2177 = vmatpush1.bf16.msra.mxu0 %v2147
          %2178 = vmatprep.subr.bf16.mxu0 0
          %2179 = vmatpush1.bf16.msra.mxu0 %v2148
          %2180 = vmatprep.subr.bf16.mxu0 0
          %2181 = vmatpush1.bf16.msra.mxu0 %v2149
          %2182 = vmatprep.subr.bf16.mxu0 0
          %2183 = vmatpush1.bf16.msra.mxu0 %v2150
          %2184 = vmatprep.subr.bf16.mxu0 0
          %2185 = vmatpush1.bf16.msra.mxu0 %v2151
          %2186 = vmatprep.subr.bf16.mxu0 0
          %2187 = vmatpush1.bf16.msra.mxu0 %v2152
          %2188 = vmatprep.subr.bf16.mxu0 0
          %2189 = vmatpush1.bf16.msra.mxu0 %v2153
          %2190 = vmatprep.subr.bf16.mxu0 0
          %2191 = vmatpush1.bf16.msra.mxu0 %v2154
          %2192 = vmatprep.subr.bf16.mxu0 0
          %2193 = vmatpush1.bf16.msra.mxu0 %v2155
          %2194 = vmatprep.subr.bf16.mxu0 0
          %2195 = vmatpush1.bf16.msra.mxu0 %v2156
          %2196 = vmatprep.mubr.bf16.mxu0 %v2161
          %2197 = vmatmul.mubr.bf16.gmra.mrb[0].mxu0 %v2160
          %v2198 = vpop.f32.mrb[0].mxu0
          %v2199 = vadd.f32 0.0, %v2198
          %v2200 = vpop.f32.mrb[0].mxu0
          %v2201 = vpop.f32.mrb[0].mxu0
          %v2202 = vpop.f32.mrb[0].mxu0
          %2203 = vdwg.mxu0
          %v2204 = vadd.f32 %v2139, %v2199
          %2205 = vst [vmem:[#allocation3] sm:$0xff] %v2204
        $region80: #{tpu_custom_call.1} parent=47 // pred_fallthru
          _
        %p2206 = scmp.eq.s32.totalorder %s29, 1
        %p2207 = pnand %p2135, %p2206
        %p2208 = pneg %p2207
        // Predicated region
        $region81: #{tpu_custom_call.1} parent=47 // pred_check
          _
        $region82: #{tpu_custom_call.1} parent=47 // pred_check_branch
          %2210 = sbr.rel (%p2207) target = $region84
        $region83: #{tpu_custom_call.1} parent=47 // pred_region
          %v2211 = vld [vmem:[#allocation3] sm:$0xff]
          %v2212 = vld [vmem:[#allocation12] sm:$0xff]
          %v2213 = vld [vmem:[#allocation12 + $0x8] sm:$0xff]
          %v2214 = vld [vmem:[#allocation12 + $0x10] sm:$0xff]
          %v2215 = vld [vmem:[#allocation12 + $0x18] sm:$0xff]
          %v2216 = vld [vmem:[#allocation12 + $0x20] sm:$0xff]
          %v2217 = vld [vmem:[#allocation12 + $0x28] sm:$0xff]
          %v2218 = vld [vmem:[#allocation12 + $0x30] sm:$0xff]
          %v2219 = vld [vmem:[#allocation12 + $0x38] sm:$0xff]
          %v2220 = vld [vmem:[#allocation12 + $0x40] sm:$0xff]
          %v2221 = vld [vmem:[#allocation12 + $0x48] sm:$0xff]
          %v2222 = vld [vmem:[#allocation12 + $0x50] sm:$0xff]
          %v2223 = vld [vmem:[#allocation12 + $0x58] sm:$0xff]
          %v2224 = vld [vmem:[#allocation12 + $0x60] sm:$0xff]
          %v2225 = vld [vmem:[#allocation12 + $0x68] sm:$0xff]
          %v2226 = vld [vmem:[#allocation12 + $0x70] sm:$0xff]
          %v2227 = vld [vmem:[#allocation12 + $0x78] sm:$0xff]
          %v2228 = vld [vmem:[%s6] sm:$0x1]
          %v2230 = vlaneseq
          %v2231 = vshrl.u32 %v2230, 7
          %v2232 = vsub.s32 0, %v2231
          %v2233 = vrot.slane %v2228, %v2232
          %2235 = vmatprep.subr.mxu0 0.0
          %2236 = vmatpush1.msra.mxu0 %v2212
          %2237 = vmatprep.subr.mxu0 0.0
          %2238 = vmatpush1.msra.mxu0 %v2213
          %2239 = vmatprep.subr.mxu0 0.0
          %2240 = vmatpush1.msra.mxu0 %v2214
          %2241 = vmatprep.subr.mxu0 0.0
          %2242 = vmatpush1.msra.mxu0 %v2215
          %2243 = vmatprep.subr.mxu0 0.0
          %2244 = vmatpush1.msra.mxu0 %v2216
          %2245 = vmatprep.subr.mxu0 0.0
          %2246 = vmatpush1.msra.mxu0 %v2217
          %2247 = vmatprep.subr.mxu0 0.0
          %2248 = vmatpush1.msra.mxu0 %v2218
          %2249 = vmatprep.subr.mxu0 0.0
          %2250 = vmatpush1.msra.mxu0 %v2219
          %2251 = vmatprep.subr.mxu0 0.0
          %2252 = vmatpush1.msra.mxu0 %v2220
          %2253 = vmatprep.subr.mxu0 0.0
          %2254 = vmatpush1.msra.mxu0 %v2221
          %2255 = vmatprep.subr.mxu0 0.0
          %2256 = vmatpush1.msra.mxu0 %v2222
          %2257 = vmatprep.subr.mxu0 0.0
          %2258 = vmatpush1.msra.mxu0 %v2223
          %2259 = vmatprep.subr.mxu0 0.0
          %2260 = vmatpush1.msra.mxu0 %v2224
          %2261 = vmatprep.subr.mxu0 0.0
          %2262 = vmatpush1.msra.mxu0 %v2225
          %2263 = vmatprep.subr.mxu0 0.0
          %2264 = vmatpush1.msra.mxu0 %v2226
          %2265 = vmatprep.subr.mxu0 0.0
          %2266 = vmatpush1.msra.mxu0 %v2227
          %2267 = vmatprep.subr.mxu0 0.0
          %2268 = vmatpush1.msra.mxu0 0.0
          %2269 = vmatprep.subr.mxu0 0.0
          %2270 = vmatpush1.msra.mxu0 0.0
          %2271 = vmatprep.subr.mxu0 0.0
          %2272 = vmatpush1.msra.mxu0 0.0
          %2273 = vmatprep.subr.mxu0 0.0
          %2274 = vmatpush1.msra.mxu0 0.0
          %2275 = vmatprep.subr.mxu0 0.0
          %2276 = vmatpush1.msra.mxu0 0.0
          %2277 = vmatprep.subr.mxu0 0.0
          %2278 = vmatpush1.msra.mxu0 0.0
          %2279 = vmatprep.subr.mxu0 0.0
          %2280 = vmatpush1.msra.mxu0 0.0
          %2281 = vmatprep.subr.mxu0 0.0
          %2282 = vmatpush1.msra.mxu0 0.0
          %2283 = vmatprep.subr.mxu0 0.0
          %2284 = vmatpush1.msra.mxu0 0.0
          %2285 = vmatprep.subr.mxu0 0.0
          %2286 = vmatpush1.msra.mxu0 0.0
          %2287 = vmatprep.subr.mxu0 0.0
          %2288 = vmatpush1.msra.mxu0 0.0
          %2289 = vmatprep.subr.mxu0 0.0
          %2290 = vmatpush1.msra.mxu0 0.0
          %2291 = vmatprep.subr.mxu0 0.0
          %2292 = vmatpush1.msra.mxu0 0.0
          %2293 = vmatprep.subr.mxu0 0.0
          %2294 = vmatpush1.msra.mxu0 0.0
          %2295 = vmatprep.subr.mxu0 0.0
          %2296 = vmatpush1.msra.mxu0 0.0
          %2297 = vmatprep.subr.mxu0 0.0
          %2298 = vmatpush1.msra.mxu0 0.0
          %2299 = vmatprep.mubr.f32.mxu0 0.0
          %2300 = vmatmul.mubr.f32.gmra.mrb[0].mxu0 %v2211
          %v2301 = vpop.f32.mrb[0].mxu0
          %v2302 = vadd.f32 %v2233, %v2301
          %v2303 = vpop.f32.mrb[0].mxu0
          %2304 = vdwg.mxu0
          %2305 = vst [vmem:[#allocation13] sm:$0xff] %v2302
        $region84: #{tpu_custom_call.1} parent=47 // pred_fallthru
          _
        // Predicated region
        $region85: #{tpu_custom_call.1} parent=47 // pred_check
          %p2306 = pneg %p201
        $region86: #{tpu_custom_call.1} parent=47 // pred_check_branch
          %2308 = sbr.rel (%p2306) target = $region88
        $region87: #{tpu_custom_call.1} parent=47 // pred_region
          %s2310 = ssub.s32 128, 128
          %2311 = vsyncadd [#allocation6], %s2310
          %s2313 = sshll.u32 [#allocation13], 4
          %s2314 = int_to_ptr.vmem [resolvable:$true] %s2313
          %2316 = dma.vmem_to_hbm [thread:$0]  %s2314, 128, %s7, [#allocation6]
        $region88: #{tpu_custom_call.1} parent=47 // pred_fallthru
          _
        // Predicated region
        $region89: #{tpu_custom_call.1} parent=47 // pred_check
          %p2317 = pneg %p201
        $region90: #{tpu_custom_call.1} parent=47 // pred_check_branch
          %2319 = sbr.rel (%p2317) target = $region92
        $region91: #{tpu_custom_call.1} parent=47 // pred_region
          %2320 = dma.done [#allocation6], 128
        $region92: #{tpu_custom_call.1} parent=47 // pred_fallthru
          _
      $region48: #{tpu_custom_call.1} parent=5 // pred_fallthru
        _
      %p2321 = scmp.le.s32.totalorder 2, %s19
      // Predicated region
      $region93: #{tpu_custom_call.1} parent=5 // pred_check
        %p2322 = pneg %p2321
      $region94: #{tpu_custom_call.1} parent=5 // pred_check_branch
        %2324 = sbr.rel (%p2322) target = $region96
      $region95: #{tpu_custom_call.1} parent=5 // pred_region
        %s2325 = ssub.s32 %s19, 2
      $region96: #{tpu_custom_call.1} parent=5 // pred_fallthru
        _
    $region6: #{tpu_custom_call.1} parent=1 // loop_footer
      %s23 = sadd.s32 1, %s19
    $region7: #{tpu_custom_call.1} parent=1 // loop_footer_branch
      %18 = sbr.rel target = $region3
    $region8: #{tpu_custom_call.1} parent=1 // loop_exit
      _
    %2326 = vsyncpa [#allocation5], 1
    %s2327 = scalar_lea.sflag [#allocation5], 1
    %2328 = vsyncpa %s2327, 1
    %2329 = vsyncpa [#allocation8], 1
    %2330 = vsyncpa [#allocation11], 1
    %s2331 = scalar_lea.sflag [#allocation11], 1
    %2332 = vsyncpa %s2331, 1
    %2333 = vsyncpa [#allocation6], 1
    %s2334 = scalar_lea.sflag [#allocation6], 1
    %2335 = vsyncpa %s2334, 1

</llo_original>
